<compile_context>
chip_gen: v5e
topology: v5e:2x2
jax: 0.10.0
libtpu: 0.0.40
codegen_flags: <defaults>
</compile_context>

<pallas_src>
import jax
import jax.numpy as jnp
from jax import lax
from jax.experimental import pallas as pl
from jax.experimental.pallas import tpu as pltpu


# ----------------------------------------------------------------------------
# Fused kernel: L-layer LSTM + IntraAttention + lane-dense output FC
# ----------------------------------------------------------------------------
def _make_fused_kernel(num_layers, S, Bp, H, compute_dtype):
    H4 = 4 * H

    def kernel(*refs):
        (loc_ref, tim_ref, mask_ref, last_ref,
         wih0_loc_ref, wih0_tim_ref, whh0_ref, b0_ref) = refs[:8]
        rest = refs[8:8 + 3 * (num_layers - 1)]
        (w_out_ref, b_out_ref, out_ref,
         xp_ref, hs_ref) = refs[8 + 3 * (num_layers - 1):]

        cd = compute_dtype

        def lstm_layer(whh_ref):
            # Gates packed along lanes in order [i | f | g | o]; one MXU push / step.
            whh = whh_ref[...].astype(cd)                      # (H, 4H)

            def step(t, carry):
                h, c = carry
                gates = xp_ref[t] + jnp.dot(h.astype(cd), whh,
                                            preferred_element_type=jnp.float32)  # (Bp, 4H)
                i_g = jax.nn.sigmoid(gates[:, 0 * H:1 * H])
                f_g = jax.nn.sigmoid(gates[:, 1 * H:2 * H])
                g_g = jnp.tanh(gates[:, 2 * H:3 * H])
                o_g = jax.nn.sigmoid(gates[:, 3 * H:4 * H])
                c_n = f_g * c + i_g * g_g
                h_n = o_g * jnp.tanh(c_n)
                hs_ref[t] = h_n                                # per-t aligned scratch store
                return h_n, c_n

            h0 = jnp.zeros((Bp, H), jnp.float32)
            lax.fori_loop(0, S, step, (h0, h0), unroll=S <= 16)

        # ---- layer 0: hoisted input projection from the two embedding slabs ----
        xp0 = (jnp.dot(loc_ref[...].astype(cd), wih0_loc_ref[...].astype(cd),
                       preferred_element_type=jnp.float32)
               + jnp.dot(tim_ref[...].astype(cd), wih0_tim_ref[...].astype(cd),
                         preferred_element_type=jnp.float32)
               + b0_ref[...])                                  # (S*Bp, 4H)
        xp_ref[...] = xp0.reshape(S, Bp, H4)
        lstm_layer(whh0_ref)

        # ---- layers >= 1: hoisted projection of the previous layer's history ----
        for l in range(1, num_layers):
            wih_ref, whh_ref, b_ref = rest[3 * (l - 1): 3 * (l - 1) + 3]
            prev = hs_ref[...].reshape(S * Bp, H)
            xp = jnp.dot(prev.astype(cd), wih_ref[...].astype(cd),
                         preferred_element_type=jnp.float32) + b_ref[...]
            xp_ref[...] = xp.reshape(S, Bp, H4)
            lstm_layer(whh_ref)

        # ---- IntraAttention, vectorized over S.
        #      Softmax over UNMASKED scores (PyTorch bug reproduced). ----
        hs = hs_ref[...]                                       # (S, Bp, H)
        km = hs * mask_ref[...]                                # pad_packed zero-padding
        q = jnp.sum(km * last_ref[...], axis=0)                # (Bp, H) lstm_last_hidden
        scores = jnp.sum(km * q[None, :, :], axis=2, keepdims=True)   # (S, Bp, 1)
        m = jnp.max(scores, axis=0, keepdims=True)
        es = jnp.exp(scores - m)
        z = jnp.sum(es, axis=0, keepdims=True)
        attn = jnp.sum(km * (es / z), axis=0)                  # (Bp, H), exact reciprocal

        # ---- lane-dense output FC over all roads (candidate gather in wrapper) ----
        out_ref[...] = (jnp.dot(attn.astype(cd), w_out_ref[...].astype(cd),
                                preferred_element_type=jnp.float32)
                        + b_out_ref[...])

    return kernel


# ----------------------------------------------------------------------------
# Parameter construction (deterministic, lane-packed gate layouts)
# ----------------------------------------------------------------------------
def init_params(key, *, road_num, time_size, road_pad, time_pad,
                road_emb_size, time_emb_size, hidden_size, lstm_layer_num):
    ks = jax.random.split(key, 4 + 4 * lstm_layer_num)
    k = 1.0 / float(hidden_size) ** 0.5
    input_size = road_emb_size + time_emb_size
    H4 = 4 * hidden_size

    road_emb = 0.1 * jax.random.normal(ks[0], (road_num, road_emb_size), jnp.float32)
    road_emb = road_emb.at[road_pad].set(0.0)          # padding_idx row is zero
    time_emb = 0.1 * jax.random.normal(ks[1], (time_size, time_emb_size), jnp.float32)
    time_emb = time_emb.at[time_pad].set(0.0)

    # Gate-packed layouts (equivalent to PyTorch weight_ih_l{l}.T with columns [i|f|g|o]).
    w_ih, w_hh, b = [], [], []
    for layer in range(lstm_layer_num):
        in_dim = input_size if layer == 0 else hidden_size
        w_ih.append(jax.random.uniform(ks[4 + 4 * layer], (in_dim, H4), jnp.float32, -k, k))
        w_hh.append(jax.random.uniform(ks[5 + 4 * layer], (hidden_size, H4), jnp.float32, -k, k))
        b_ih = jax.random.uniform(ks[6 + 4 * layer], (1, H4), jnp.float32, -k, k)
        b_hh = jax.random.uniform(ks[7 + 4 * layer], (1, H4), jnp.float32, -k, k)
        b.append(b_ih + b_hh)

    w_out = jax.random.uniform(ks[2], (hidden_size, road_num), jnp.float32, -k, k)
    b_out = jax.random.uniform(ks[3], (1, road_num), jnp.float32, -k, k)

    return dict(road_emb=road_emb, time_emb=time_emb,
                w_ih=w_ih, w_hh=w_hh, b=b, w_out=w_out, b_out=b_out)


# ----------------------------------------------------------------------------
# Forward pass
# ----------------------------------------------------------------------------
def function_gfc_forward(params, trace_loc, trace_time, candidate_set, trace_mask=None,
                         *, compute_dtype=jnp.float32):
    """Returns candidate_score: (batch_size, candidate_size)."""
    B, S = trace_loc.shape
    H = params['w_hh'][0].shape[0]
    road_num = params['w_out'].shape[1]
    L = len(params['w_ih'])
    Er = params['road_emb'].shape[1]
    Et = params['time_emb'].shape[1]
    Bp = max(8, ((B + 7) // 8) * 8)                  # pad batch to full sublane tiles

    # Embedding lookups gathered directly in time-major order (the transpose is on tiny
    # int32 index arrays only — no activation transpose).  Dropout: inference -> identity.
    loc_emb = jnp.take(params['road_emb'], trace_loc.T, axis=0)    # (S, B, Er)
    tim_emb = jnp.take(params['time_emb'], trace_time.T, axis=0)   # (S, B, Et)
    if Bp != B:
        pad = [(0, 0), (0, Bp - B), (0, 0)]
        loc_emb = jnp.pad(loc_emb, pad)
        tim_emb = jnp.pad(tim_emb, pad)
    loc2d = loc_emb.reshape(S * Bp, Er)
    tim2d = tim_emb.reshape(S * Bp, Et)

    # Length-derived masks (pack_padded_sequence implies right padding).
    if trace_mask is not None:
        lens = jnp.sum(trace_mask, axis=1).astype(jnp.int32)       # (B,)
    else:
        lens = jnp.full((B,), S, dtype=jnp.int32)
    lens_p = jnp.pad(lens, (0, Bp - B))                            # padded rows: len 0
    t_idx = jnp.arange(S, dtype=jnp.int32)[:, None]                # (S, 1)
    mask3d = (t_idx < lens_p[None, :]).astype(jnp.float32)[..., None]        # (S, Bp, 1)
    last3d = (t_idx == lens_p[None, :] - 1).astype(jnp.float32)[..., None]   # (S, Bp, 1)

    # Layer-0 weight split by input rows so the kernel never needs a concat.
    wih0_loc = params['w_ih'][0][:Er, :]
    wih0_tim = params['w_ih'][0][Er:, :]
    layer_args = []
    for l in range(1, L):
        layer_args += [params['w_ih'][l], params['w_hh'][l], params['b'][l]]

    # Explicit VMEM budget (scratch + residents), capped at v7x physical (64 MiB).
    H4 = 4 * H
    resident = 4 * (S * Bp * (H4 + H)                # xp + hs scratch
                    + S * Bp * (Er + Et + 2)         # input slabs + mask + last
                    + Bp * road_num                  # output
                    + (Er + Et + H) * H4 + H4        # layer-0 weights + bias
                    + (L - 1) * (2 * H * H4 + H4)    # layers >= 1
                    + H * road_num + road_num)       # out FC
    vmem_limit = int(min(max(2 * resident + (8 << 20), 32 << 20), 64 << 20))

    n_in = 8 + 3 * (L - 1) + 2
    score = pl.pallas_call(
        _make_fused_kernel(L, S, Bp, H, compute_dtype),
        out_shape=jax.ShapeDtypeStruct((Bp, road_num), jnp.float32),
        in_specs=[pl.BlockSpec(memory_space=pltpu.MemorySpace.VMEM)] * n_in,
        out_specs=pl.BlockSpec(memory_space=pltpu.MemorySpace.VMEM),
        scratch_shapes=[pltpu.VMEM((S, Bp, H4), jnp.float32),     # hoisted input proj
                        pltpu.VMEM((S, Bp, H), jnp.float32)],     # hidden history
        compiler_params=pltpu.CompilerParams(vmem_limit_bytes=vmem_limit),
    )(loc2d, tim2d, mask3d, last3d,
      wih0_loc, wih0_tim, params['w_hh'][0], params['b'][0],
      *layer_args, params['w_out'], params['b_out'])

    # torch.gather(score, 1, candidate_set) on the lane-dense score matrix.
    cand = candidate_set.astype(jnp.int32)
    return jnp.take_along_axis(score[:B], cand, axis=1)


# ----------------------------------------------------------------------------
if __name__ == "__main__":
    # Small config consistent with the module.
    B, S = 4, 8
    road_num, time_size = 256, 32
    road_pad, time_pad = road_num - 1, time_size - 1
    road_emb_size, time_emb_size = 16, 16
    hidden_size, lstm_layer_num = 32, 2
    candidate_size = 8

    key = jax.random.PRNGKey(0)
    kp, k1, k2, k3 = jax.random.split(key, 4)

    params = init_params(kp, road_num=road_num, time_size=time_size,
                         road_pad=road_pad, time_pad=time_pad,
                         road_emb_size=road_emb_size, time_emb_size=time_emb_size,
                         hidden_size=hidden_size, lstm_layer_num=lstm_layer_num)

    trace_loc = jax.random.randint(k1, (B, S), 0, road_num - 1, jnp.int32)
    trace_time = jax.random.randint(k2, (B, S), 0, time_size - 1, jnp.int32)
    candidate_set = jax.random.randint(k3, (B, candidate_size), 0, road_num, jnp.int32)

    # Lengths (first sequence full so max(lengths) == seq_len).
    lengths = jnp.array([S, 5, 7, 3], dtype=jnp.int32)
    trace_mask = (jnp.arange(S)[None, :] < lengths[:, None]).astype(jnp.int32)
    # Force padded positions to the padding indices (as a padded dataset would).
    trace_loc = jnp.where(trace_mask == 1, trace_loc, road_pad)
    trace_time = jnp.where(trace_mask == 1, trace_time, time_pad)

    fwd = jax.jit(function_gfc_forward)

    out = jax.block_until_ready(fwd(params, trace_loc, trace_time, candidate_set, trace_mask))
    assert out.shape == (B, candidate_size) and bool(jnp.all(jnp.isfinite(out)))

    # Also exercise the trace_mask=None path.
    out2 = jax.block_until_ready(fwd(params, trace_loc, trace_time, candidate_set, None))
    assert out2.shape == (B, candidate_size) and bool(jnp.all(jnp.isfinite(out2)))

    print("KERNEL_OK")
</pallas_src>

<mosaic_0001>
module attributes {stable_mosaic.version = 11 : i64} {
  func.func @kernel(%arg0: memref<64x16xf32, #tpu.memory_space<vmem>>, %arg1: memref<64x16xf32, #tpu.memory_space<vmem>>, %arg2: memref<8x8x1xf32, #tpu.memory_space<vmem>>, %arg3: memref<8x8x1xf32, #tpu.memory_space<vmem>>, %arg4: memref<16x128xf32, #tpu.memory_space<vmem>>, %arg5: memref<16x128xf32, #tpu.memory_space<vmem>>, %arg6: memref<32x128xf32, #tpu.memory_space<vmem>>, %arg7: memref<1x128xf32, #tpu.memory_space<vmem>>, %arg8: memref<32x128xf32, #tpu.memory_space<vmem>>, %arg9: memref<32x128xf32, #tpu.memory_space<vmem>>, %arg10: memref<1x128xf32, #tpu.memory_space<vmem>>, %arg11: memref<32x256xf32, #tpu.memory_space<vmem>>, %arg12: memref<1x256xf32, #tpu.memory_space<vmem>>, %arg13: memref<8x256xf32, #tpu.memory_space<vmem>>, %arg14: memref<8x8x128xf32, #tpu.memory_space<vmem>>, %arg15: memref<8x8x32xf32, #tpu.memory_space<vmem>>) attributes {dimension_semantics = [], scalar_prefetch = 0 : i64, scratch_operands = 2 : i64, tpu.core_type = #tpu.core_type<tc>} {
    %c0 = arith.constant 0 : index
    %c0_0 = arith.constant 0 : index
    %0 = vector.load %arg0[%c0, %c0_0] : memref<64x16xf32, #tpu.memory_space<vmem>>, vector<64x16xf32>
    %c0_1 = arith.constant 0 : index
    %c0_2 = arith.constant 0 : index
    %1 = vector.load %arg4[%c0_1, %c0_2] : memref<16x128xf32, #tpu.memory_space<vmem>>, vector<16x128xf32>
    %cst = arith.constant dense<0.000000e+00> : vector<64x128xf32>
    %2 = tpu.matmul %0, %1, %cst {dimension_numbers = #tpu.dot_dimension_numbers<[1], [0], [0], [1], [0, 0, 1, 1], [], []>} : vector<64x16xf32>, vector<16x128xf32>, vector<64x128xf32> -> vector<64x128xf32>
    %c0_3 = arith.constant 0 : index
    %c0_4 = arith.constant 0 : index
    %3 = vector.load %arg1[%c0_3, %c0_4] : memref<64x16xf32, #tpu.memory_space<vmem>>, vector<64x16xf32>
    %c0_5 = arith.constant 0 : index
    %c0_6 = arith.constant 0 : index
    %4 = vector.load %arg5[%c0_5, %c0_6] : memref<16x128xf32, #tpu.memory_space<vmem>>, vector<16x128xf32>
    %cst_7 = arith.constant dense<0.000000e+00> : vector<64x128xf32>
    %5 = tpu.matmul %3, %4, %cst_7 {dimension_numbers = #tpu.dot_dimension_numbers<[1], [0], [0], [1], [0, 0, 1, 1], [], []>} : vector<64x16xf32>, vector<16x128xf32>, vector<64x128xf32> -> vector<64x128xf32>
    %6 = arith.addf %2, %5 : vector<64x128xf32>
    %c0_8 = arith.constant 0 : index
    %c0_9 = arith.constant 0 : index
    %7 = vector.load %arg7[%c0_8, %c0_9] : memref<1x128xf32, #tpu.memory_space<vmem>>, vector<1x128xf32>
    %8 = vector.broadcast %7 : vector<1x128xf32> to vector<64x128xf32>
    %9 = arith.addf %6, %8 : vector<64x128xf32>
    %10 = vector.shape_cast %9 : vector<64x128xf32> to vector<8x8x128xf32>
    %c0_10 = arith.constant 0 : index
    %c0_11 = arith.constant 0 : index
    %c0_12 = arith.constant 0 : index
    %11 = vector.load %arg14[%c0_10, %c0_11, %c0_12] : memref<8x8x128xf32, #tpu.memory_space<vmem>>, vector<8x8x128xf32>
    tpu.vector_store %arg14[%c0_10, %c0_11, %c0_12], %10 {strides = array<i32>} : memref<8x8x128xf32, #tpu.memory_space<vmem>>, vector<8x8x128xf32>,
    %c0_13 = arith.constant 0 : index
    %c0_14 = arith.constant 0 : index
    %12 = vector.load %arg6[%c0_13, %c0_14] : memref<32x128xf32, #tpu.memory_space<vmem>>, vector<32x128xf32>
    %cst_15 = arith.constant 0.000000e+00 : f32
    %13 = vector.broadcast %cst_15 : f32 to vector<8x32xf32>
    %c0_i32 = arith.constant 0 : i32
    %14 = arith.index_cast %c0_i32 : i32 to index
    %c0_16 = arith.constant 0 : index
    %c0_17 = arith.constant 0 : index
    %15 = vector.load %arg14[%14, %c0_16, %c0_17] : memref<8x8x128xf32, #tpu.memory_space<vmem>>, vector<1x8x128xf32>
    %16 = vector.shape_cast %15 : vector<1x8x128xf32> to vector<8x128xf32>
    %cst_18 = arith.constant dense<0.000000e+00> : vector<8x128xf32>
    %17 = tpu.matmul %13, %12, %cst_18 {dimension_numbers = #tpu.dot_dimension_numbers<[1], [0], [0], [1], [0, 0, 1, 1], [], []>} : vector<8x32xf32>, vector<32x128xf32>, vector<8x128xf32> -> vector<8x128xf32>
    %18 = arith.addf %16, %17 : vector<8x128xf32>
    %19 = vector.extract_strided_slice %18 {offsets = [0, 0], sizes = [8, 32], strides = [1, 1]} : vector<8x128xf32> to vector<8x32xf32>
    %20 = arith.negf %19 : vector<8x32xf32>
    %21 = math.exp %20 : vector<8x32xf32>
    %cst_19 = arith.constant 1.000000e+00 : f32
    %22 = vector.broadcast %cst_19 : f32 to vector<8x32xf32>
    %23 = arith.addf %22, %21 : vector<8x32xf32>
    %24 = arith.divf %22, %23 : vector<8x32xf32>
    %25 = vector.extract_strided_slice %18 {offsets = [0, 32], sizes = [8, 32], strides = [1, 1]} : vector<8x128xf32> to vector<8x32xf32>
    %26 = arith.negf %25 : vector<8x32xf32>
    %27 = math.exp %26 : vector<8x32xf32>
    %cst_20 = arith.constant 1.000000e+00 : f32
    %28 = vector.broadcast %cst_20 : f32 to vector<8x32xf32>
    %29 = arith.addf %28, %27 : vector<8x32xf32>
    %30 = arith.divf %28, %29 : vector<8x32xf32>
    %31 = vector.extract_strided_slice %18 {offsets = [0, 64], sizes = [8, 32], strides = [1, 1]} : vector<8x128xf32> to vector<8x32xf32>
    %32 = math.tanh %31 : vector<8x32xf32>
    %33 = vector.extract_strided_slice %18 {offsets = [0, 96], sizes = [8, 32], strides = [1, 1]} : vector<8x128xf32> to vector<8x32xf32>
    %34 = arith.negf %33 : vector<8x32xf32>
    %35 = math.exp %34 : vector<8x32xf32>
    %cst_21 = arith.constant 1.000000e+00 : f32
    %36 = vector.broadcast %cst_21 : f32 to vector<8x32xf32>
    %37 = arith.addf %36, %35 : vector<8x32xf32>
    %38 = arith.divf %36, %37 : vector<8x32xf32>
    %39 = arith.mulf %30, %13 : vector<8x32xf32>
    %40 = arith.mulf %24, %32 : vector<8x32xf32>
    %41 = arith.addf %39, %40 : vector<8x32xf32>
    %42 = math.tanh %41 : vector<8x32xf32>
    %43 = arith.mulf %38, %42 : vector<8x32xf32>
    %44 = arith.index_cast %c0_i32 : i32 to index
    %c0_22 = arith.constant 0 : index
    %c0_23 = arith.constant 0 : index
    %45 = vector.load %arg15[%44, %c0_22, %c0_23] : memref<8x8x32xf32, #tpu.memory_space<vmem>>, vector<1x8x32xf32>
    %46 = vector.shape_cast %45 : vector<1x8x32xf32> to vector<8x32xf32>
    %47 = vector.shape_cast %43 : vector<8x32xf32> to vector<1x8x32xf32>
    tpu.vector_store %arg15[%44, %c0_22, %c0_23], %47 {strides = array<i32>} : memref<8x8x32xf32, #tpu.memory_space<vmem>>, vector<1x8x32xf32>,
    %c1_i32 = arith.constant 1 : i32
    %48 = arith.index_cast %c1_i32 : i32 to index
    %c0_24 = arith.constant 0 : index
    %c0_25 = arith.constant 0 : index
    %49 = vector.load %arg14[%48, %c0_24, %c0_25] : memref<8x8x128xf32, #tpu.memory_space<vmem>>, vector<1x8x128xf32>
    %50 = vector.shape_cast %49 : vector<1x8x128xf32> to vector<8x128xf32>
    %cst_26 = arith.constant dense<0.000000e+00> : vector<8x128xf32>
    %51 = tpu.matmul %43, %12, %cst_26 {dimension_numbers = #tpu.dot_dimension_numbers<[1], [0], [0], [1], [0, 0, 1, 1], [], []>} : vector<8x32xf32>, vector<32x128xf32>, vector<8x128xf32> -> vector<8x128xf32>
    %52 = arith.addf %50, %51 : vector<8x128xf32>
    %53 = vector.extract_strided_slice %52 {offsets = [0, 0], sizes = [8, 32], strides = [1, 1]} : vector<8x128xf32> to vector<8x32xf32>
    %54 = arith.negf %53 : vector<8x32xf32>
    %55 = math.exp %54 : vector<8x32xf32>
    %cst_27 = arith.constant 1.000000e+00 : f32
    %56 = vector.broadcast %cst_27 : f32 to vector<8x32xf32>
    %57 = arith.addf %56, %55 : vector<8x32xf32>
    %58 = arith.divf %56, %57 : vector<8x32xf32>
    %59 = vector.extract_strided_slice %52 {offsets = [0, 32], sizes = [8, 32], strides = [1, 1]} : vector<8x128xf32> to vector<8x32xf32>
    %60 = arith.negf %59 : vector<8x32xf32>
    %61 = math.exp %60 : vector<8x32xf32>
    %cst_28 = arith.constant 1.000000e+00 : f32
    %62 = vector.broadcast %cst_28 : f32 to vector<8x32xf32>
    %63 = arith.addf %62, %61 : vector<8x32xf32>
    %64 = arith.divf %62, %63 : vector<8x32xf32>
    %65 = vector.extract_strided_slice %52 {offsets = [0, 64], sizes = [8, 32], strides = [1, 1]} : vector<8x128xf32> to vector<8x32xf32>
    %66 = math.tanh %65 : vector<8x32xf32>
    %67 = vector.extract_strided_slice %52 {offsets = [0, 96], sizes = [8, 32], strides = [1, 1]} : vector<8x128xf32> to vector<8x32xf32>
    %68 = arith.negf %67 : vector<8x32xf32>
    %69 = math.exp %68 : vector<8x32xf32>
    %cst_29 = arith.constant 1.000000e+00 : f32
    %70 = vector.broadcast %cst_29 : f32 to vector<8x32xf32>
    %71 = arith.addf %70, %69 : vector<8x32xf32>
    %72 = arith.divf %70, %71 : vector<8x32xf32>
    %73 = arith.mulf %64, %41 : vector<8x32xf32>
    %74 = arith.mulf %58, %66 : vector<8x32xf32>
    %75 = arith.addf %73, %74 : vector<8x32xf32>
    %76 = math.tanh %75 : vector<8x32xf32>
    %77 = arith.mulf %72, %76 : vector<8x32xf32>
    %78 = arith.index_cast %c1_i32 : i32 to index
    %c0_30 = arith.constant 0 : index
    %c0_31 = arith.constant 0 : index
    %79 = vector.load %arg15[%78, %c0_30, %c0_31] : memref<8x8x32xf32, #tpu.memory_space<vmem>>, vector<1x8x32xf32>
    %80 = vector.shape_cast %79 : vector<1x8x32xf32> to vector<8x32xf32>
    %81 = vector.shape_cast %77 : vector<8x32xf32> to vector<1x8x32xf32>
    tpu.vector_store %arg15[%78, %c0_30, %c0_31], %81 {strides = array<i32>} : memref<8x8x32xf32, #tpu.memory_space<vmem>>, vector<1x8x32xf32>,
    %c2_i32 = arith.constant 2 : i32
    %82 = arith.index_cast %c2_i32 : i32 to index
    %c0_32 = arith.constant 0 : index
    %c0_33 = arith.constant 0 : index
    %83 = vector.load %arg14[%82, %c0_32, %c0_33] : memref<8x8x128xf32, #tpu.memory_space<vmem>>, vector<1x8x128xf32>
    %84 = vector.shape_cast %83 : vector<1x8x128xf32> to vector<8x128xf32>
    %cst_34 = arith.constant dense<0.000000e+00> : vector<8x128xf32>
    %85 = tpu.matmul %77, %12, %cst_34 {dimension_numbers = #tpu.dot_dimension_numbers<[1], [0], [0], [1], [0, 0, 1, 1], [], []>} : vector<8x32xf32>, vector<32x128xf32>, vector<8x128xf32> -> vector<8x128xf32>
    %86 = arith.addf %84, %85 : vector<8x128xf32>
    %87 = vector.extract_strided_slice %86 {offsets = [0, 0], sizes = [8, 32], strides = [1, 1]} : vector<8x128xf32> to vector<8x32xf32>
    %88 = arith.negf %87 : vector<8x32xf32>
    %89 = math.exp %88 : vector<8x32xf32>
    %cst_35 = arith.constant 1.000000e+00 : f32
    %90 = vector.broadcast %cst_35 : f32 to vector<8x32xf32>
    %91 = arith.addf %90, %89 : vector<8x32xf32>
    %92 = arith.divf %90, %91 : vector<8x32xf32>
    %93 = vector.extract_strided_slice %86 {offsets = [0, 32], sizes = [8, 32], strides = [1, 1]} : vector<8x128xf32> to vector<8x32xf32>
    %94 = arith.negf %93 : vector<8x32xf32>
    %95 = math.exp %94 : vector<8x32xf32>
    %cst_36 = arith.constant 1.000000e+00 : f32
    %96 = vector.broadcast %cst_36 : f32 to vector<8x32xf32>
    %97 = arith.addf %96, %95 : vector<8x32xf32>
    %98 = arith.divf %96, %97 : vector<8x32xf32>
    %99 = vector.extract_strided_slice %86 {offsets = [0, 64], sizes = [8, 32], strides = [1, 1]} : vector<8x128xf32> to vector<8x32xf32>
    %100 = math.tanh %99 : vector<8x32xf32>
    %101 = vector.extract_strided_slice %86 {offsets = [0, 96], sizes = [8, 32], strides = [1, 1]} : vector<8x128xf32> to vector<8x32xf32>
    %102 = arith.negf %101 : vector<8x32xf32>
    %103 = math.exp %102 : vector<8x32xf32>
    %cst_37 = arith.constant 1.000000e+00 : f32
    %104 = vector.broadcast %cst_37 : f32 to vector<8x32xf32>
    %105 = arith.addf %104, %103 : vector<8x32xf32>
    %106 = arith.divf %104, %105 : vector<8x32xf32>
    %107 = arith.mulf %98, %75 : vector<8x32xf32>
    %108 = arith.mulf %92, %100 : vector<8x32xf32>
    %109 = arith.addf %107, %108 : vector<8x32xf32>
    %110 = math.tanh %109 : vector<8x32xf32>
    %111 = arith.mulf %106, %110 : vector<8x32xf32>
    %112 = arith.index_cast %c2_i32 : i32 to index
    %c0_38 = arith.constant 0 : index
    %c0_39 = arith.constant 0 : index
    %113 = vector.load %arg15[%112, %c0_38, %c0_39] : memref<8x8x32xf32, #tpu.memory_space<vmem>>, vector<1x8x32xf32>
    %114 = vector.shape_cast %113 : vector<1x8x32xf32> to vector<8x32xf32>
    %115 = vector.shape_cast %111 : vector<8x32xf32> to vector<1x8x32xf32>
    tpu.vector_store %arg15[%112, %c0_38, %c0_39], %115 {strides = array<i32>} : memref<8x8x32xf32, #tpu.memory_space<vmem>>, vector<1x8x32xf32>,
    %c3_i32 = arith.constant 3 : i32
    %116 = arith.index_cast %c3_i32 : i32 to index
    %c0_40 = arith.constant 0 : index
    %c0_41 = arith.constant 0 : index
    %117 = vector.load %arg14[%116, %c0_40, %c0_41] : memref<8x8x128xf32, #tpu.memory_space<vmem>>, vector<1x8x128xf32>
    %118 = vector.shape_cast %117 : vector<1x8x128xf32> to vector<8x128xf32>
    %cst_42 = arith.constant dense<0.000000e+00> : vector<8x128xf32>
    %119 = tpu.matmul %111, %12, %cst_42 {dimension_numbers = #tpu.dot_dimension_numbers<[1], [0], [0], [1], [0, 0, 1, 1], [], []>} : vector<8x32xf32>, vector<32x128xf32>, vector<8x128xf32> -> vector<8x128xf32>
    %120 = arith.addf %118, %119 : vector<8x128xf32>
    %121 = vector.extract_strided_slice %120 {offsets = [0, 0], sizes = [8, 32], strides = [1, 1]} : vector<8x128xf32> to vector<8x32xf32>
    %122 = arith.negf %121 : vector<8x32xf32>
    %123 = math.exp %122 : vector<8x32xf32>
    %cst_43 = arith.constant 1.000000e+00 : f32
    %124 = vector.broadcast %cst_43 : f32 to vector<8x32xf32>
    %125 = arith.addf %124, %123 : vector<8x32xf32>
    %126 = arith.divf %124, %125 : vector<8x32xf32>
    %127 = vector.extract_strided_slice %120 {offsets = [0, 32], sizes = [8, 32], strides = [1, 1]} : vector<8x128xf32> to vector<8x32xf32>
    %128 = arith.negf %127 : vector<8x32xf32>
    %129 = math.exp %128 : vector<8x32xf32>
    %cst_44 = arith.constant 1.000000e+00 : f32
    %130 = vector.broadcast %cst_44 : f32 to vector<8x32xf32>
    %131 = arith.addf %130, %129 : vector<8x32xf32>
    %132 = arith.divf %130, %131 : vector<8x32xf32>
    %133 = vector.extract_strided_slice %120 {offsets = [0, 64], sizes = [8, 32], strides = [1, 1]} : vector<8x128xf32> to vector<8x32xf32>
    %134 = math.tanh %133 : vector<8x32xf32>
    %135 = vector.extract_strided_slice %120 {offsets = [0, 96], sizes = [8, 32], strides = [1, 1]} : vector<8x128xf32> to vector<8x32xf32>
    %136 = arith.negf %135 : vector<8x32xf32>
    %137 = math.exp %136 : vector<8x32xf32>
    %cst_45 = arith.constant 1.000000e+00 : f32
    %138 = vector.broadcast %cst_45 : f32 to vector<8x32xf32>
    %139 = arith.addf %138, %137 : vector<8x32xf32>
    %140 = arith.divf %138, %139 : vector<8x32xf32>
    %141 = arith.mulf %132, %109 : vector<8x32xf32>
    %142 = arith.mulf %126, %134 : vector<8x32xf32>
    %143 = arith.addf %141, %142 : vector<8x32xf32>
    %144 = math.tanh %143 : vector<8x32xf32>
    %145 = arith.mulf %140, %144 : vector<8x32xf32>
    %146 = arith.index_cast %c3_i32 : i32 to index
    %c0_46 = arith.constant 0 : index
    %c0_47 = arith.constant 0 : index
    %147 = vector.load %arg15[%146, %c0_46, %c0_47] : memref<8x8x32xf32, #tpu.memory_space<vmem>>, vector<1x8x32xf32>
    %148 = vector.shape_cast %147 : vector<1x8x32xf32> to vector<8x32xf32>
    %149 = vector.shape_cast %145 : vector<8x32xf32> to vector<1x8x32xf32>
    tpu.vector_store %arg15[%146, %c0_46, %c0_47], %149 {strides = array<i32>} : memref<8x8x32xf32, #tpu.memory_space<vmem>>, vector<1x8x32xf32>,
    %c4_i32 = arith.constant 4 : i32
    %150 = arith.index_cast %c4_i32 : i32 to index
    %c0_48 = arith.constant 0 : index
    %c0_49 = arith.constant 0 : index
    %151 = vector.load %arg14[%150, %c0_48, %c0_49] : memref<8x8x128xf32, #tpu.memory_space<vmem>>, vector<1x8x128xf32>
    %152 = vector.shape_cast %151 : vector<1x8x128xf32> to vector<8x128xf32>
    %cst_50 = arith.constant dense<0.000000e+00> : vector<8x128xf32>
    %153 = tpu.matmul %145, %12, %cst_50 {dimension_numbers = #tpu.dot_dimension_numbers<[1], [0], [0], [1], [0, 0, 1, 1], [], []>} : vector<8x32xf32>, vector<32x128xf32>, vector<8x128xf32> -> vector<8x128xf32>
    %154 = arith.addf %152, %153 : vector<8x128xf32>
    %155 = vector.extract_strided_slice %154 {offsets = [0, 0], sizes = [8, 32], strides = [1, 1]} : vector<8x128xf32> to vector<8x32xf32>
    %156 = arith.negf %155 : vector<8x32xf32>
    %157 = math.exp %156 : vector<8x32xf32>
    %cst_51 = arith.constant 1.000000e+00 : f32
    %158 = vector.broadcast %cst_51 : f32 to vector<8x32xf32>
    %159 = arith.addf %158, %157 : vector<8x32xf32>
    %160 = arith.divf %158, %159 : vector<8x32xf32>
    %161 = vector.extract_strided_slice %154 {offsets = [0, 32], sizes = [8, 32], strides = [1, 1]} : vector<8x128xf32> to vector<8x32xf32>
    %162 = arith.negf %161 : vector<8x32xf32>
    %163 = math.exp %162 : vector<8x32xf32>
    %cst_52 = arith.constant 1.000000e+00 : f32
    %164 = vector.broadcast %cst_52 : f32 to vector<8x32xf32>
    %165 = arith.addf %164, %163 : vector<8x32xf32>
    %166 = arith.divf %164, %165 : vector<8x32xf32>
    %167 = vector.extract_strided_slice %154 {offsets = [0, 64], sizes = [8, 32], strides = [1, 1]} : vector<8x128xf32> to vector<8x32xf32>
    %168 = math.tanh %167 : vector<8x32xf32>
    %169 = vector.extract_strided_slice %154 {offsets = [0, 96], sizes = [8, 32], strides = [1, 1]} : vector<8x128xf32> to vector<8x32xf32>
    %170 = arith.negf %169 : vector<8x32xf32>
    %171 = math.exp %170 : vector<8x32xf32>
    %cst_53 = arith.constant 1.000000e+00 : f32
    %172 = vector.broadcast %cst_53 : f32 to vector<8x32xf32>
    %173 = arith.addf %172, %171 : vector<8x32xf32>
    %174 = arith.divf %172, %173 : vector<8x32xf32>
    %175 = arith.mulf %166, %143 : vector<8x32xf32>
    %176 = arith.mulf %160, %168 : vector<8x32xf32>
    %177 = arith.addf %175, %176 : vector<8x32xf32>
    %178 = math.tanh %177 : vector<8x32xf32>
    %179 = arith.mulf %174, %178 : vector<8x32xf32>
    %180 = arith.index_cast %c4_i32 : i32 to index
    %c0_54 = arith.constant 0 : index
    %c0_55 = arith.constant 0 : index
    %181 = vector.load %arg15[%180, %c0_54, %c0_55] : memref<8x8x32xf32, #tpu.memory_space<vmem>>, vector<1x8x32xf32>
    %182 = vector.shape_cast %181 : vector<1x8x32xf32> to vector<8x32xf32>
    %183 = vector.shape_cast %179 : vector<8x32xf32> to vector<1x8x32xf32>
    tpu.vector_store %arg15[%180, %c0_54, %c0_55], %183 {strides = array<i32>} : memref<8x8x32xf32, #tpu.memory_space<vmem>>, vector<1x8x32xf32>,
    %c5_i32 = arith.constant 5 : i32
    %184 = arith.index_cast %c5_i32 : i32 to index
    %c0_56 = arith.constant 0 : index
    %c0_57 = arith.constant 0 : index
    %185 = vector.load %arg14[%184, %c0_56, %c0_57] : memref<8x8x128xf32, #tpu.memory_space<vmem>>, vector<1x8x128xf32>
    %186 = vector.shape_cast %185 : vector<1x8x128xf32> to vector<8x128xf32>
    %cst_58 = arith.constant dense<0.000000e+00> : vector<8x128xf32>
    %187 = tpu.matmul %179, %12, %cst_58 {dimension_numbers = #tpu.dot_dimension_numbers<[1], [0], [0], [1], [0, 0, 1, 1], [], []>} : vector<8x32xf32>, vector<32x128xf32>, vector<8x128xf32> -> vector<8x128xf32>
    %188 = arith.addf %186, %187 : vector<8x128xf32>
    %189 = vector.extract_strided_slice %188 {offsets = [0, 0], sizes = [8, 32], strides = [1, 1]} : vector<8x128xf32> to vector<8x32xf32>
    %190 = arith.negf %189 : vector<8x32xf32>
    %191 = math.exp %190 : vector<8x32xf32>
    %cst_59 = arith.constant 1.000000e+00 : f32
    %192 = vector.broadcast %cst_59 : f32 to vector<8x32xf32>
    %193 = arith.addf %192, %191 : vector<8x32xf32>
    %194 = arith.divf %192, %193 : vector<8x32xf32>
    %195 = vector.extract_strided_slice %188 {offsets = [0, 32], sizes = [8, 32], strides = [1, 1]} : vector<8x128xf32> to vector<8x32xf32>
    %196 = arith.negf %195 : vector<8x32xf32>
    %197 = math.exp %196 : vector<8x32xf32>
    %cst_60 = arith.constant 1.000000e+00 : f32
    %198 = vector.broadcast %cst_60 : f32 to vector<8x32xf32>
    %199 = arith.addf %198, %197 : vector<8x32xf32>
    %200 = arith.divf %198, %199 : vector<8x32xf32>
    %201 = vector.extract_strided_slice %188 {offsets = [0, 64], sizes = [8, 32], strides = [1, 1]} : vector<8x128xf32> to vector<8x32xf32>
    %202 = math.tanh %201 : vector<8x32xf32>
    %203 = vector.extract_strided_slice %188 {offsets = [0, 96], sizes = [8, 32], strides = [1, 1]} : vector<8x128xf32> to vector<8x32xf32>
    %204 = arith.negf %203 : vector<8x32xf32>
    %205 = math.exp %204 : vector<8x32xf32>
    %cst_61 = arith.constant 1.000000e+00 : f32
    %206 = vector.broadcast %cst_61 : f32 to vector<8x32xf32>
    %207 = arith.addf %206, %205 : vector<8x32xf32>
    %208 = arith.divf %206, %207 : vector<8x32xf32>
    %209 = arith.mulf %200, %177 : vector<8x32xf32>
    %210 = arith.mulf %194, %202 : vector<8x32xf32>
    %211 = arith.addf %209, %210 : vector<8x32xf32>
    %212 = math.tanh %211 : vector<8x32xf32>
    %213 = arith.mulf %208, %212 : vector<8x32xf32>
    %214 = arith.index_cast %c5_i32 : i32 to index
    %c0_62 = arith.constant 0 : index
    %c0_63 = arith.constant 0 : index
    %215 = vector.load %arg15[%214, %c0_62, %c0_63] : memref<8x8x32xf32, #tpu.memory_space<vmem>>, vector<1x8x32xf32>
    %216 = vector.shape_cast %215 : vector<1x8x32xf32> to vector<8x32xf32>
    %217 = vector.shape_cast %213 : vector<8x32xf32> to vector<1x8x32xf32>
    tpu.vector_store %arg15[%214, %c0_62, %c0_63], %217 {strides = array<i32>} : memref<8x8x32xf32, #tpu.memory_space<vmem>>, vector<1x8x32xf32>,
    %c6_i32 = arith.constant 6 : i32
    %218 = arith.index_cast %c6_i32 : i32 to index
    %c0_64 = arith.constant 0 : index
    %c0_65 = arith.constant 0 : index
    %219 = vector.load %arg14[%218, %c0_64, %c0_65] : memref<8x8x128xf32, #tpu.memory_space<vmem>>, vector<1x8x128xf32>
    %220 = vector.shape_cast %219 : vector<1x8x128xf32> to vector<8x128xf32>
    %cst_66 = arith.constant dense<0.000000e+00> : vector<8x128xf32>
    %221 = tpu.matmul %213, %12, %cst_66 {dimension_numbers = #tpu.dot_dimension_numbers<[1], [0], [0], [1], [0, 0, 1, 1], [], []>} : vector<8x32xf32>, vector<32x128xf32>, vector<8x128xf32> -> vector<8x128xf32>
    %222 = arith.addf %220, %221 : vector<8x128xf32>
    %223 = vector.extract_strided_slice %222 {offsets = [0, 0], sizes = [8, 32], strides = [1, 1]} : vector<8x128xf32> to vector<8x32xf32>
    %224 = arith.negf %223 : vector<8x32xf32>
    %225 = math.exp %224 : vector<8x32xf32>
    %cst_67 = arith.constant 1.000000e+00 : f32
    %226 = vector.broadcast %cst_67 : f32 to vector<8x32xf32>
    %227 = arith.addf %226, %225 : vector<8x32xf32>
    %228 = arith.divf %226, %227 : vector<8x32xf32>
    %229 = vector.extract_strided_slice %222 {offsets = [0, 32], sizes = [8, 32], strides = [1, 1]} : vector<8x128xf32> to vector<8x32xf32>
    %230 = arith.negf %229 : vector<8x32xf32>
    %231 = math.exp %230 : vector<8x32xf32>
    %cst_68 = arith.constant 1.000000e+00 : f32
    %232 = vector.broadcast %cst_68 : f32 to vector<8x32xf32>
    %233 = arith.addf %232, %231 : vector<8x32xf32>
    %234 = arith.divf %232, %233 : vector<8x32xf32>
    %235 = vector.extract_strided_slice %222 {offsets = [0, 64], sizes = [8, 32], strides = [1, 1]} : vector<8x128xf32> to vector<8x32xf32>
    %236 = math.tanh %235 : vector<8x32xf32>
    %237 = vector.extract_strided_slice %222 {offsets = [0, 96], sizes = [8, 32], strides = [1, 1]} : vector<8x128xf32> to vector<8x32xf32>
    %238 = arith.negf %237 : vector<8x32xf32>
    %239 = math.exp %238 : vector<8x32xf32>
    %cst_69 = arith.constant 1.000000e+00 : f32
    %240 = vector.broadcast %cst_69 : f32 to vector<8x32xf32>
    %241 = arith.addf %240, %239 : vector<8x32xf32>
    %242 = arith.divf %240, %241 : vector<8x32xf32>
    %243 = arith.mulf %234, %211 : vector<8x32xf32>
    %244 = arith.mulf %228, %236 : vector<8x32xf32>
    %245 = arith.addf %243, %244 : vector<8x32xf32>
    %246 = math.tanh %245 : vector<8x32xf32>
    %247 = arith.mulf %242, %246 : vector<8x32xf32>
    %248 = arith.index_cast %c6_i32 : i32 to index
    %c0_70 = arith.constant 0 : index
    %c0_71 = arith.constant 0 : index
    %249 = vector.load %arg15[%248, %c0_70, %c0_71] : memref<8x8x32xf32, #tpu.memory_space<vmem>>, vector<1x8x32xf32>
    %250 = vector.shape_cast %249 : vector<1x8x32xf32> to vector<8x32xf32>
    %251 = vector.shape_cast %247 : vector<8x32xf32> to vector<1x8x32xf32>
    tpu.vector_store %arg15[%248, %c0_70, %c0_71], %251 {strides = array<i32>} : memref<8x8x32xf32, #tpu.memory_space<vmem>>, vector<1x8x32xf32>,
    %c7_i32 = arith.constant 7 : i32
    %252 = arith.index_cast %c7_i32 : i32 to index
    %c0_72 = arith.constant 0 : index
    %c0_73 = arith.constant 0 : index
    %253 = vector.load %arg14[%252, %c0_72, %c0_73] : memref<8x8x128xf32, #tpu.memory_space<vmem>>, vector<1x8x128xf32>
    %254 = vector.shape_cast %253 : vector<1x8x128xf32> to vector<8x128xf32>
    %cst_74 = arith.constant dense<0.000000e+00> : vector<8x128xf32>
    %255 = tpu.matmul %247, %12, %cst_74 {dimension_numbers = #tpu.dot_dimension_numbers<[1], [0], [0], [1], [0, 0, 1, 1], [], []>} : vector<8x32xf32>, vector<32x128xf32>, vector<8x128xf32> -> vector<8x128xf32>
    %256 = arith.addf %254, %255 : vector<8x128xf32>
    %257 = vector.extract_strided_slice %256 {offsets = [0, 0], sizes = [8, 32], strides = [1, 1]} : vector<8x128xf32> to vector<8x32xf32>
    %258 = arith.negf %257 : vector<8x32xf32>
    %259 = math.exp %258 : vector<8x32xf32>
    %cst_75 = arith.constant 1.000000e+00 : f32
    %260 = vector.broadcast %cst_75 : f32 to vector<8x32xf32>
    %261 = arith.addf %260, %259 : vector<8x32xf32>
    %262 = arith.divf %260, %261 : vector<8x32xf32>
    %263 = vector.extract_strided_slice %256 {offsets = [0, 32], sizes = [8, 32], strides = [1, 1]} : vector<8x128xf32> to vector<8x32xf32>
    %264 = arith.negf %263 : vector<8x32xf32>
    %265 = math.exp %264 : vector<8x32xf32>
    %cst_76 = arith.constant 1.000000e+00 : f32
    %266 = vector.broadcast %cst_76 : f32 to vector<8x32xf32>
    %267 = arith.addf %266, %265 : vector<8x32xf32>
    %268 = arith.divf %266, %267 : vector<8x32xf32>
    %269 = vector.extract_strided_slice %256 {offsets = [0, 64], sizes = [8, 32], strides = [1, 1]} : vector<8x128xf32> to vector<8x32xf32>
    %270 = math.tanh %269 : vector<8x32xf32>
    %271 = vector.extract_strided_slice %256 {offsets = [0, 96], sizes = [8, 32], strides = [1, 1]} : vector<8x128xf32> to vector<8x32xf32>
    %272 = arith.negf %271 : vector<8x32xf32>
    %273 = math.exp %272 : vector<8x32xf32>
    %cst_77 = arith.constant 1.000000e+00 : f32
    %274 = vector.broadcast %cst_77 : f32 to vector<8x32xf32>
    %275 = arith.addf %274, %273 : vector<8x32xf32>
    %276 = arith.divf %274, %275 : vector<8x32xf32>
    %277 = arith.mulf %268, %245 : vector<8x32xf32>
    %278 = arith.mulf %262, %270 : vector<8x32xf32>
    %279 = arith.addf %277, %278 : vector<8x32xf32>
    %280 = math.tanh %279 : vector<8x32xf32>
    %281 = arith.mulf %276, %280 : vector<8x32xf32>
    %282 = arith.index_cast %c7_i32 : i32 to index
    %c0_78 = arith.constant 0 : index
    %c0_79 = arith.constant 0 : index
    %283 = vector.load %arg15[%282, %c0_78, %c0_79] : memref<8x8x32xf32, #tpu.memory_space<vmem>>, vector<1x8x32xf32>
    %284 = vector.shape_cast %283 : vector<1x8x32xf32> to vector<8x32xf32>
    %285 = vector.shape_cast %281 : vector<8x32xf32> to vector<1x8x32xf32>
    tpu.vector_store %arg15[%282, %c0_78, %c0_79], %285 {strides = array<i32>} : memref<8x8x32xf32, #tpu.memory_space<vmem>>, vector<1x8x32xf32>,
    %c8_i32 = arith.constant 8 : i32
    %c0_80 = arith.constant 0 : index
    %c0_81 = arith.constant 0 : index
    %c0_82 = arith.constant 0 : index
    %286 = vector.load %arg15[%c0_80, %c0_81, %c0_82] : memref<8x8x32xf32, #tpu.memory_space<vmem>>, vector<8x8x32xf32>
    %287 = vector.shape_cast %286 : vector<8x8x32xf32> to vector<64x32xf32>
    %c0_83 = arith.constant 0 : index
    %c0_84 = arith.constant 0 : index
    %288 = vector.load %arg8[%c0_83, %c0_84] : memref<32x128xf32, #tpu.memory_space<vmem>>, vector<32x128xf32>
    %cst_85 = arith.constant dense<0.000000e+00> : vector<64x128xf32>
    %289 = tpu.matmul %287, %288, %cst_85 {dimension_numbers = #tpu.dot_dimension_numbers<[1], [0], [0], [1], [0, 0, 1, 1], [], []>} : vector<64x32xf32>, vector<32x128xf32>, vector<64x128xf32> -> vector<64x128xf32>
    %c0_86 = arith.constant 0 : index
    %c0_87 = arith.constant 0 : index
    %290 = vector.load %arg10[%c0_86, %c0_87] : memref<1x128xf32, #tpu.memory_space<vmem>>, vector<1x128xf32>
    %291 = vector.broadcast %290 : vector<1x128xf32> to vector<64x128xf32>
    %292 = arith.addf %289, %291 : vector<64x128xf32>
    %293 = vector.shape_cast %292 : vector<64x128xf32> to vector<8x8x128xf32>
    %c0_88 = arith.constant 0 : index
    %c0_89 = arith.constant 0 : index
    %c0_90 = arith.constant 0 : index
    %294 = vector.load %arg14[%c0_88, %c0_89, %c0_90] : memref<8x8x128xf32, #tpu.memory_space<vmem>>, vector<8x8x128xf32>
    tpu.vector_store %arg14[%c0_88, %c0_89, %c0_90], %293 {strides = array<i32>} : memref<8x8x128xf32, #tpu.memory_space<vmem>>, vector<8x8x128xf32>,
    %c0_91 = arith.constant 0 : index
    %c0_92 = arith.constant 0 : index
    %295 = vector.load %arg9[%c0_91, %c0_92] : memref<32x128xf32, #tpu.memory_space<vmem>>, vector<32x128xf32>
    %cst_93 = arith.constant 0.000000e+00 : f32
    %296 = vector.broadcast %cst_93 : f32 to vector<8x32xf32>
    %c0_i32_94 = arith.constant 0 : i32
    %297 = arith.index_cast %c0_i32_94 : i32 to index
    %c0_95 = arith.constant 0 : index
    %c0_96 = arith.constant 0 : index
    %298 = vector.load %arg14[%297, %c0_95, %c0_96] : memref<8x8x128xf32, #tpu.memory_space<vmem>>, vector<1x8x128xf32>
    %299 = vector.shape_cast %298 : vector<1x8x128xf32> to vector<8x128xf32>
    %cst_97 = arith.constant dense<0.000000e+00> : vector<8x128xf32>
    %300 = tpu.matmul %296, %295, %cst_97 {dimension_numbers = #tpu.dot_dimension_numbers<[1], [0], [0], [1], [0, 0, 1, 1], [], []>} : vector<8x32xf32>, vector<32x128xf32>, vector<8x128xf32> -> vector<8x128xf32>
    %301 = arith.addf %299, %300 : vector<8x128xf32>
    %302 = vector.extract_strided_slice %301 {offsets = [0, 0], sizes = [8, 32], strides = [1, 1]} : vector<8x128xf32> to vector<8x32xf32>
    %303 = arith.negf %302 : vector<8x32xf32>
    %304 = math.exp %303 : vector<8x32xf32>
    %cst_98 = arith.constant 1.000000e+00 : f32
    %305 = vector.broadcast %cst_98 : f32 to vector<8x32xf32>
    %306 = arith.addf %305, %304 : vector<8x32xf32>
    %307 = arith.divf %305, %306 : vector<8x32xf32>
    %308 = vector.extract_strided_slice %301 {offsets = [0, 32], sizes = [8, 32], strides = [1, 1]} : vector<8x128xf32> to vector<8x32xf32>
    %309 = arith.negf %308 : vector<8x32xf32>
    %310 = math.exp %309 : vector<8x32xf32>
    %cst_99 = arith.constant 1.000000e+00 : f32
    %311 = vector.broadcast %cst_99 : f32 to vector<8x32xf32>
    %312 = arith.addf %311, %310 : vector<8x32xf32>
    %313 = arith.divf %311, %312 : vector<8x32xf32>
    %314 = vector.extract_strided_slice %301 {offsets = [0, 64], sizes = [8, 32], strides = [1, 1]} : vector<8x128xf32> to vector<8x32xf32>
    %315 = math.tanh %314 : vector<8x32xf32>
    %316 = vector.extract_strided_slice %301 {offsets = [0, 96], sizes = [8, 32], strides = [1, 1]} : vector<8x128xf32> to vector<8x32xf32>
    %317 = arith.negf %316 : vector<8x32xf32>
    %318 = math.exp %317 : vector<8x32xf32>
    %cst_100 = arith.constant 1.000000e+00 : f32
    %319 = vector.broadcast %cst_100 : f32 to vector<8x32xf32>
    %320 = arith.addf %319, %318 : vector<8x32xf32>
    %321 = arith.divf %319, %320 : vector<8x32xf32>
    %322 = arith.mulf %313, %296 : vector<8x32xf32>
    %323 = arith.mulf %307, %315 : vector<8x32xf32>
    %324 = arith.addf %322, %323 : vector<8x32xf32>
    %325 = math.tanh %324 : vector<8x32xf32>
    %326 = arith.mulf %321, %325 : vector<8x32xf32>
    %327 = arith.index_cast %c0_i32_94 : i32 to index
    %c0_101 = arith.constant 0 : index
    %c0_102 = arith.constant 0 : index
    %328 = vector.load %arg15[%327, %c0_101, %c0_102] : memref<8x8x32xf32, #tpu.memory_space<vmem>>, vector<1x8x32xf32>
    %329 = vector.shape_cast %328 : vector<1x8x32xf32> to vector<8x32xf32>
    %330 = vector.shape_cast %326 : vector<8x32xf32> to vector<1x8x32xf32>
    tpu.vector_store %arg15[%327, %c0_101, %c0_102], %330 {strides = array<i32>} : memref<8x8x32xf32, #tpu.memory_space<vmem>>, vector<1x8x32xf32>,
    %c1_i32_103 = arith.constant 1 : i32
    %331 = arith.index_cast %c1_i32_103 : i32 to index
    %c0_104 = arith.constant 0 : index
    %c0_105 = arith.constant 0 : index
    %332 = vector.load %arg14[%331, %c0_104, %c0_105] : memref<8x8x128xf32, #tpu.memory_space<vmem>>, vector<1x8x128xf32>
    %333 = vector.shape_cast %332 : vector<1x8x128xf32> to vector<8x128xf32>
    %cst_106 = arith.constant dense<0.000000e+00> : vector<8x128xf32>
    %334 = tpu.matmul %326, %295, %cst_106 {dimension_numbers = #tpu.dot_dimension_numbers<[1], [0], [0], [1], [0, 0, 1, 1], [], []>} : vector<8x32xf32>, vector<32x128xf32>, vector<8x128xf32> -> vector<8x128xf32>
    %335 = arith.addf %333, %334 : vector<8x128xf32>
    %336 = vector.extract_strided_slice %335 {offsets = [0, 0], sizes = [8, 32], strides = [1, 1]} : vector<8x128xf32> to vector<8x32xf32>
    %337 = arith.negf %336 : vector<8x32xf32>
    %338 = math.exp %337 : vector<8x32xf32>
    %cst_107 = arith.constant 1.000000e+00 : f32
    %339 = vector.broadcast %cst_107 : f32 to vector<8x32xf32>
    %340 = arith.addf %339, %338 : vector<8x32xf32>
    %341 = arith.divf %339, %340 : vector<8x32xf32>
    %342 = vector.extract_strided_slice %335 {offsets = [0, 32], sizes = [8, 32], strides = [1, 1]} : vector<8x128xf32> to vector<8x32xf32>
    %343 = arith.negf %342 : vector<8x32xf32>
    %344 = math.exp %343 : vector<8x32xf32>
    %cst_108 = arith.constant 1.000000e+00 : f32
    %345 = vector.broadcast %cst_108 : f32 to vector<8x32xf32>
    %346 = arith.addf %345, %344 : vector<8x32xf32>
    %347 = arith.divf %345, %346 : vector<8x32xf32>
    %348 = vector.extract_strided_slice %335 {offsets = [0, 64], sizes = [8, 32], strides = [1, 1]} : vector<8x128xf32> to vector<8x32xf32>
    %349 = math.tanh %348 : vector<8x32xf32>
    %350 = vector.extract_strided_slice %335 {offsets = [0, 96], sizes = [8, 32], strides = [1, 1]} : vector<8x128xf32> to vector<8x32xf32>
    %351 = arith.negf %350 : vector<8x32xf32>
    %352 = math.exp %351 : vector<8x32xf32>
    %cst_109 = arith.constant 1.000000e+00 : f32
    %353 = vector.broadcast %cst_109 : f32 to vector<8x32xf32>
    %354 = arith.addf %353, %352 : vector<8x32xf32>
    %355 = arith.divf %353, %354 : vector<8x32xf32>
    %356 = arith.mulf %347, %324 : vector<8x32xf32>
    %357 = arith.mulf %341, %349 : vector<8x32xf32>
    %358 = arith.addf %356, %357 : vector<8x32xf32>
    %359 = math.tanh %358 : vector<8x32xf32>
    %360 = arith.mulf %355, %359 : vector<8x32xf32>
    %361 = arith.index_cast %c1_i32_103 : i32 to index
    %c0_110 = arith.constant 0 : index
    %c0_111 = arith.constant 0 : index
    %362 = vector.load %arg15[%361, %c0_110, %c0_111] : memref<8x8x32xf32, #tpu.memory_space<vmem>>, vector<1x8x32xf32>
    %363 = vector.shape_cast %362 : vector<1x8x32xf32> to vector<8x32xf32>
    %364 = vector.shape_cast %360 : vector<8x32xf32> to vector<1x8x32xf32>
    tpu.vector_store %arg15[%361, %c0_110, %c0_111], %364 {strides = array<i32>} : memref<8x8x32xf32, #tpu.memory_space<vmem>>, vector<1x8x32xf32>,
    %c2_i32_112 = arith.constant 2 : i32
    %365 = arith.index_cast %c2_i32_112 : i32 to index
    %c0_113 = arith.constant 0 : index
    %c0_114 = arith.constant 0 : index
    %366 = vector.load %arg14[%365, %c0_113, %c0_114] : memref<8x8x128xf32, #tpu.memory_space<vmem>>, vector<1x8x128xf32>
    %367 = vector.shape_cast %366 : vector<1x8x128xf32> to vector<8x128xf32>
    %cst_115 = arith.constant dense<0.000000e+00> : vector<8x128xf32>
    %368 = tpu.matmul %360, %295, %cst_115 {dimension_numbers = #tpu.dot_dimension_numbers<[1], [0], [0], [1], [0, 0, 1, 1], [], []>} : vector<8x32xf32>, vector<32x128xf32>, vector<8x128xf32> -> vector<8x128xf32>
    %369 = arith.addf %367, %368 : vector<8x128xf32>
    %370 = vector.extract_strided_slice %369 {offsets = [0, 0], sizes = [8, 32], strides = [1, 1]} : vector<8x128xf32> to vector<8x32xf32>
    %371 = arith.negf %370 : vector<8x32xf32>
    %372 = math.exp %371 : vector<8x32xf32>
    %cst_116 = arith.constant 1.000000e+00 : f32
    %373 = vector.broadcast %cst_116 : f32 to vector<8x32xf32>
    %374 = arith.addf %373, %372 : vector<8x32xf32>
    %375 = arith.divf %373, %374 : vector<8x32xf32>
    %376 = vector.extract_strided_slice %369 {offsets = [0, 32], sizes = [8, 32], strides = [1, 1]} : vector<8x128xf32> to vector<8x32xf32>
    %377 = arith.negf %376 : vector<8x32xf32>
    %378 = math.exp %377 : vector<8x32xf32>
    %cst_117 = arith.constant 1.000000e+00 : f32
    %379 = vector.broadcast %cst_117 : f32 to vector<8x32xf32>
    %380 = arith.addf %379, %378 : vector<8x32xf32>
    %381 = arith.divf %379, %380 : vector<8x32xf32>
    %382 = vector.extract_strided_slice %369 {offsets = [0, 64], sizes = [8, 32], strides = [1, 1]} : vector<8x128xf32> to vector<8x32xf32>
    %383 = math.tanh %382 : vector<8x32xf32>
    %384 = vector.extract_strided_slice %369 {offsets = [0, 96], sizes = [8, 32], strides = [1, 1]} : vector<8x128xf32> to vector<8x32xf32>
    %385 = arith.negf %384 : vector<8x32xf32>
    %386 = math.exp %385 : vector<8x32xf32>
    %cst_118 = arith.constant 1.000000e+00 : f32
    %387 = vector.broadcast %cst_118 : f32 to vector<8x32xf32>
    %388 = arith.addf %387, %386 : vector<8x32xf32>
    %389 = arith.divf %387, %388 : vector<8x32xf32>
    %390 = arith.mulf %381, %358 : vector<8x32xf32>
    %391 = arith.mulf %375, %383 : vector<8x32xf32>
    %392 = arith.addf %390, %391 : vector<8x32xf32>
    %393 = math.tanh %392 : vector<8x32xf32>
    %394 = arith.mulf %389, %393 : vector<8x32xf32>
    %395 = arith.index_cast %c2_i32_112 : i32 to index
    %c0_119 = arith.constant 0 : index
    %c0_120 = arith.constant 0 : index
    %396 = vector.load %arg15[%395, %c0_119, %c0_120] : memref<8x8x32xf32, #tpu.memory_space<vmem>>, vector<1x8x32xf32>
    %397 = vector.shape_cast %396 : vector<1x8x32xf32> to vector<8x32xf32>
    %398 = vector.shape_cast %394 : vector<8x32xf32> to vector<1x8x32xf32>
    tpu.vector_store %arg15[%395, %c0_119, %c0_120], %398 {strides = array<i32>} : memref<8x8x32xf32, #tpu.memory_space<vmem>>, vector<1x8x32xf32>,
    %c3_i32_121 = arith.constant 3 : i32
    %399 = arith.index_cast %c3_i32_121 : i32 to index
    %c0_122 = arith.constant 0 : index
    %c0_123 = arith.constant 0 : index
    %400 = vector.load %arg14[%399, %c0_122, %c0_123] : memref<8x8x128xf32, #tpu.memory_space<vmem>>, vector<1x8x128xf32>
    %401 = vector.shape_cast %400 : vector<1x8x128xf32> to vector<8x128xf32>
    %cst_124 = arith.constant dense<0.000000e+00> : vector<8x128xf32>
    %402 = tpu.matmul %394, %295, %cst_124 {dimension_numbers = #tpu.dot_dimension_numbers<[1], [0], [0], [1], [0, 0, 1, 1], [], []>} : vector<8x32xf32>, vector<32x128xf32>, vector<8x128xf32> -> vector<8x128xf32>
    %403 = arith.addf %401, %402 : vector<8x128xf32>
    %404 = vector.extract_strided_slice %403 {offsets = [0, 0], sizes = [8, 32], strides = [1, 1]} : vector<8x128xf32> to vector<8x32xf32>
    %405 = arith.negf %404 : vector<8x32xf32>
    %406 = math.exp %405 : vector<8x32xf32>
    %cst_125 = arith.constant 1.000000e+00 : f32
    %407 = vector.broadcast %cst_125 : f32 to vector<8x32xf32>
    %408 = arith.addf %407, %406 : vector<8x32xf32>
    %409 = arith.divf %407, %408 : vector<8x32xf32>
    %410 = vector.extract_strided_slice %403 {offsets = [0, 32], sizes = [8, 32], strides = [1, 1]} : vector<8x128xf32> to vector<8x32xf32>
    %411 = arith.negf %410 : vector<8x32xf32>
    %412 = math.exp %411 : vector<8x32xf32>
    %cst_126 = arith.constant 1.000000e+00 : f32
    %413 = vector.broadcast %cst_126 : f32 to vector<8x32xf32>
    %414 = arith.addf %413, %412 : vector<8x32xf32>
    %415 = arith.divf %413, %414 : vector<8x32xf32>
    %416 = vector.extract_strided_slice %403 {offsets = [0, 64], sizes = [8, 32], strides = [1, 1]} : vector<8x128xf32> to vector<8x32xf32>
    %417 = math.tanh %416 : vector<8x32xf32>
    %418 = vector.extract_strided_slice %403 {offsets = [0, 96], sizes = [8, 32], strides = [1, 1]} : vector<8x128xf32> to vector<8x32xf32>
    %419 = arith.negf %418 : vector<8x32xf32>
    %420 = math.exp %419 : vector<8x32xf32>
    %cst_127 = arith.constant 1.000000e+00 : f32
    %421 = vector.broadcast %cst_127 : f32 to vector<8x32xf32>
    %422 = arith.addf %421, %420 : vector<8x32xf32>
    %423 = arith.divf %421, %422 : vector<8x32xf32>
    %424 = arith.mulf %415, %392 : vector<8x32xf32>
    %425 = arith.mulf %409, %417 : vector<8x32xf32>
    %426 = arith.addf %424, %425 : vector<8x32xf32>
    %427 = math.tanh %426 : vector<8x32xf32>
    %428 = arith.mulf %423, %427 : vector<8x32xf32>
    %429 = arith.index_cast %c3_i32_121 : i32 to index
    %c0_128 = arith.constant 0 : index
    %c0_129 = arith.constant 0 : index
    %430 = vector.load %arg15[%429, %c0_128, %c0_129] : memref<8x8x32xf32, #tpu.memory_space<vmem>>, vector<1x8x32xf32>
    %431 = vector.shape_cast %430 : vector<1x8x32xf32> to vector<8x32xf32>
    %432 = vector.shape_cast %428 : vector<8x32xf32> to vector<1x8x32xf32>
    tpu.vector_store %arg15[%429, %c0_128, %c0_129], %432 {strides = array<i32>} : memref<8x8x32xf32, #tpu.memory_space<vmem>>, vector<1x8x32xf32>,
    %c4_i32_130 = arith.constant 4 : i32
    %433 = arith.index_cast %c4_i32_130 : i32 to index
    %c0_131 = arith.constant 0 : index
    %c0_132 = arith.constant 0 : index
    %434 = vector.load %arg14[%433, %c0_131, %c0_132] : memref<8x8x128xf32, #tpu.memory_space<vmem>>, vector<1x8x128xf32>
    %435 = vector.shape_cast %434 : vector<1x8x128xf32> to vector<8x128xf32>
    %cst_133 = arith.constant dense<0.000000e+00> : vector<8x128xf32>
    %436 = tpu.matmul %428, %295, %cst_133 {dimension_numbers = #tpu.dot_dimension_numbers<[1], [0], [0], [1], [0, 0, 1, 1], [], []>} : vector<8x32xf32>, vector<32x128xf32>, vector<8x128xf32> -> vector<8x128xf32>
    %437 = arith.addf %435, %436 : vector<8x128xf32>
    %438 = vector.extract_strided_slice %437 {offsets = [0, 0], sizes = [8, 32], strides = [1, 1]} : vector<8x128xf32> to vector<8x32xf32>
    %439 = arith.negf %438 : vector<8x32xf32>
    %440 = math.exp %439 : vector<8x32xf32>
    %cst_134 = arith.constant 1.000000e+00 : f32
    %441 = vector.broadcast %cst_134 : f32 to vector<8x32xf32>
    %442 = arith.addf %441, %440 : vector<8x32xf32>
    %443 = arith.divf %441, %442 : vector<8x32xf32>
    %444 = vector.extract_strided_slice %437 {offsets = [0, 32], sizes = [8, 32], strides = [1, 1]} : vector<8x128xf32> to vector<8x32xf32>
    %445 = arith.negf %444 : vector<8x32xf32>
    %446 = math.exp %445 : vector<8x32xf32>
    %cst_135 = arith.constant 1.000000e+00 : f32
    %447 = vector.broadcast %cst_135 : f32 to vector<8x32xf32>
    %448 = arith.addf %447, %446 : vector<8x32xf32>
    %449 = arith.divf %447, %448 : vector<8x32xf32>
    %450 = vector.extract_strided_slice %437 {offsets = [0, 64], sizes = [8, 32], strides = [1, 1]} : vector<8x128xf32> to vector<8x32xf32>
    %451 = math.tanh %450 : vector<8x32xf32>
    %452 = vector.extract_strided_slice %437 {offsets = [0, 96], sizes = [8, 32], strides = [1, 1]} : vector<8x128xf32> to vector<8x32xf32>
    %453 = arith.negf %452 : vector<8x32xf32>
    %454 = math.exp %453 : vector<8x32xf32>
    %cst_136 = arith.constant 1.000000e+00 : f32
    %455 = vector.broadcast %cst_136 : f32 to vector<8x32xf32>
    %456 = arith.addf %455, %454 : vector<8x32xf32>
    %457 = arith.divf %455, %456 : vector<8x32xf32>
    %458 = arith.mulf %449, %426 : vector<8x32xf32>
    %459 = arith.mulf %443, %451 : vector<8x32xf32>
    %460 = arith.addf %458, %459 : vector<8x32xf32>
    %461 = math.tanh %460 : vector<8x32xf32>
    %462 = arith.mulf %457, %461 : vector<8x32xf32>
    %463 = arith.index_cast %c4_i32_130 : i32 to index
    %c0_137 = arith.constant 0 : index
    %c0_138 = arith.constant 0 : index
    %464 = vector.load %arg15[%463, %c0_137, %c0_138] : memref<8x8x32xf32, #tpu.memory_space<vmem>>, vector<1x8x32xf32>
    %465 = vector.shape_cast %464 : vector<1x8x32xf32> to vector<8x32xf32>
    %466 = vector.shape_cast %462 : vector<8x32xf32> to vector<1x8x32xf32>
    tpu.vector_store %arg15[%463, %c0_137, %c0_138], %466 {strides = array<i32>} : memref<8x8x32xf32, #tpu.memory_space<vmem>>, vector<1x8x32xf32>,
    %c5_i32_139 = arith.constant 5 : i32
    %467 = arith.index_cast %c5_i32_139 : i32 to index
    %c0_140 = arith.constant 0 : index
    %c0_141 = arith.constant 0 : index
    %468 = vector.load %arg14[%467, %c0_140, %c0_141] : memref<8x8x128xf32, #tpu.memory_space<vmem>>, vector<1x8x128xf32>
    %469 = vector.shape_cast %468 : vector<1x8x128xf32> to vector<8x128xf32>
    %cst_142 = arith.constant dense<0.000000e+00> : vector<8x128xf32>
    %470 = tpu.matmul %462, %295, %cst_142 {dimension_numbers = #tpu.dot_dimension_numbers<[1], [0], [0], [1], [0, 0, 1, 1], [], []>} : vector<8x32xf32>, vector<32x128xf32>, vector<8x128xf32> -> vector<8x128xf32>
    %471 = arith.addf %469, %470 : vector<8x128xf32>
    %472 = vector.extract_strided_slice %471 {offsets = [0, 0], sizes = [8, 32], strides = [1, 1]} : vector<8x128xf32> to vector<8x32xf32>
    %473 = arith.negf %472 : vector<8x32xf32>
    %474 = math.exp %473 : vector<8x32xf32>
    %cst_143 = arith.constant 1.000000e+00 : f32
    %475 = vector.broadcast %cst_143 : f32 to vector<8x32xf32>
    %476 = arith.addf %475, %474 : vector<8x32xf32>
    %477 = arith.divf %475, %476 : vector<8x32xf32>
    %478 = vector.extract_strided_slice %471 {offsets = [0, 32], sizes = [8, 32], strides = [1, 1]} : vector<8x128xf32> to vector<8x32xf32>
    %479 = arith.negf %478 : vector<8x32xf32>
    %480 = math.exp %479 : vector<8x32xf32>
    %cst_144 = arith.constant 1.000000e+00 : f32
    %481 = vector.broadcast %cst_144 : f32 to vector<8x32xf32>
    %482 = arith.addf %481, %480 : vector<8x32xf32>
    %483 = arith.divf %481, %482 : vector<8x32xf32>
    %484 = vector.extract_strided_slice %471 {offsets = [0, 64], sizes = [8, 32], strides = [1, 1]} : vector<8x128xf32> to vector<8x32xf32>
    %485 = math.tanh %484 : vector<8x32xf32>
    %486 = vector.extract_strided_slice %471 {offsets = [0, 96], sizes = [8, 32], strides = [1, 1]} : vector<8x128xf32> to vector<8x32xf32>
    %487 = arith.negf %486 : vector<8x32xf32>
    %488 = math.exp %487 : vector<8x32xf32>
    %cst_145 = arith.constant 1.000000e+00 : f32
    %489 = vector.broadcast %cst_145 : f32 to vector<8x32xf32>
    %490 = arith.addf %489, %488 : vector<8x32xf32>
    %491 = arith.divf %489, %490 : vector<8x32xf32>
    %492 = arith.mulf %483, %460 : vector<8x32xf32>
    %493 = arith.mulf %477, %485 : vector<8x32xf32>
    %494 = arith.addf %492, %493 : vector<8x32xf32>
    %495 = math.tanh %494 : vector<8x32xf32>
    %496 = arith.mulf %491, %495 : vector<8x32xf32>
    %497 = arith.index_cast %c5_i32_139 : i32 to index
    %c0_146 = arith.constant 0 : index
    %c0_147 = arith.constant 0 : index
    %498 = vector.load %arg15[%497, %c0_146, %c0_147] : memref<8x8x32xf32, #tpu.memory_space<vmem>>, vector<1x8x32xf32>
    %499 = vector.shape_cast %498 : vector<1x8x32xf32> to vector<8x32xf32>
    %500 = vector.shape_cast %496 : vector<8x32xf32> to vector<1x8x32xf32>
    tpu.vector_store %arg15[%497, %c0_146, %c0_147], %500 {strides = array<i32>} : memref<8x8x32xf32, #tpu.memory_space<vmem>>, vector<1x8x32xf32>,
    %c6_i32_148 = arith.constant 6 : i32
    %501 = arith.index_cast %c6_i32_148 : i32 to index
    %c0_149 = arith.constant 0 : index
    %c0_150 = arith.constant 0 : index
    %502 = vector.load %arg14[%501, %c0_149, %c0_150] : memref<8x8x128xf32, #tpu.memory_space<vmem>>, vector<1x8x128xf32>
    %503 = vector.shape_cast %502 : vector<1x8x128xf32> to vector<8x128xf32>
    %cst_151 = arith.constant dense<0.000000e+00> : vector<8x128xf32>
    %504 = tpu.matmul %496, %295, %cst_151 {dimension_numbers = #tpu.dot_dimension_numbers<[1], [0], [0], [1], [0, 0, 1, 1], [], []>} : vector<8x32xf32>, vector<32x128xf32>, vector<8x128xf32> -> vector<8x128xf32>
    %505 = arith.addf %503, %504 : vector<8x128xf32>
    %506 = vector.extract_strided_slice %505 {offsets = [0, 0], sizes = [8, 32], strides = [1, 1]} : vector<8x128xf32> to vector<8x32xf32>
    %507 = arith.negf %506 : vector<8x32xf32>
    %508 = math.exp %507 : vector<8x32xf32>
    %cst_152 = arith.constant 1.000000e+00 : f32
    %509 = vector.broadcast %cst_152 : f32 to vector<8x32xf32>
    %510 = arith.addf %509, %508 : vector<8x32xf32>
    %511 = arith.divf %509, %510 : vector<8x32xf32>
    %512 = vector.extract_strided_slice %505 {offsets = [0, 32], sizes = [8, 32], strides = [1, 1]} : vector<8x128xf32> to vector<8x32xf32>
    %513 = arith.negf %512 : vector<8x32xf32>
    %514 = math.exp %513 : vector<8x32xf32>
    %cst_153 = arith.constant 1.000000e+00 : f32
    %515 = vector.broadcast %cst_153 : f32 to vector<8x32xf32>
    %516 = arith.addf %515, %514 : vector<8x32xf32>
    %517 = arith.divf %515, %516 : vector<8x32xf32>
    %518 = vector.extract_strided_slice %505 {offsets = [0, 64], sizes = [8, 32], strides = [1, 1]} : vector<8x128xf32> to vector<8x32xf32>
    %519 = math.tanh %518 : vector<8x32xf32>
    %520 = vector.extract_strided_slice %505 {offsets = [0, 96], sizes = [8, 32], strides = [1, 1]} : vector<8x128xf32> to vector<8x32xf32>
    %521 = arith.negf %520 : vector<8x32xf32>
    %522 = math.exp %521 : vector<8x32xf32>
    %cst_154 = arith.constant 1.000000e+00 : f32
    %523 = vector.broadcast %cst_154 : f32 to vector<8x32xf32>
    %524 = arith.addf %523, %522 : vector<8x32xf32>
    %525 = arith.divf %523, %524 : vector<8x32xf32>
    %526 = arith.mulf %517, %494 : vector<8x32xf32>
    %527 = arith.mulf %511, %519 : vector<8x32xf32>
    %528 = arith.addf %526, %527 : vector<8x32xf32>
    %529 = math.tanh %528 : vector<8x32xf32>
    %530 = arith.mulf %525, %529 : vector<8x32xf32>
    %531 = arith.index_cast %c6_i32_148 : i32 to index
    %c0_155 = arith.constant 0 : index
    %c0_156 = arith.constant 0 : index
    %532 = vector.load %arg15[%531, %c0_155, %c0_156] : memref<8x8x32xf32, #tpu.memory_space<vmem>>, vector<1x8x32xf32>
    %533 = vector.shape_cast %532 : vector<1x8x32xf32> to vector<8x32xf32>
    %534 = vector.shape_cast %530 : vector<8x32xf32> to vector<1x8x32xf32>
    tpu.vector_store %arg15[%531, %c0_155, %c0_156], %534 {strides = array<i32>} : memref<8x8x32xf32, #tpu.memory_space<vmem>>, vector<1x8x32xf32>,
    %c7_i32_157 = arith.constant 7 : i32
    %535 = arith.index_cast %c7_i32_157 : i32 to index
    %c0_158 = arith.constant 0 : index
    %c0_159 = arith.constant 0 : index
    %536 = vector.load %arg14[%535, %c0_158, %c0_159] : memref<8x8x128xf32, #tpu.memory_space<vmem>>, vector<1x8x128xf32>
    %537 = vector.shape_cast %536 : vector<1x8x128xf32> to vector<8x128xf32>
    %cst_160 = arith.constant dense<0.000000e+00> : vector<8x128xf32>
    %538 = tpu.matmul %530, %295, %cst_160 {dimension_numbers = #tpu.dot_dimension_numbers<[1], [0], [0], [1], [0, 0, 1, 1], [], []>} : vector<8x32xf32>, vector<32x128xf32>, vector<8x128xf32> -> vector<8x128xf32>
    %539 = arith.addf %537, %538 : vector<8x128xf32>
    %540 = vector.extract_strided_slice %539 {offsets = [0, 0], sizes = [8, 32], strides = [1, 1]} : vector<8x128xf32> to vector<8x32xf32>
    %541 = arith.negf %540 : vector<8x32xf32>
    %542 = math.exp %541 : vector<8x32xf32>
    %cst_161 = arith.constant 1.000000e+00 : f32
    %543 = vector.broadcast %cst_161 : f32 to vector<8x32xf32>
    %544 = arith.addf %543, %542 : vector<8x32xf32>
    %545 = arith.divf %543, %544 : vector<8x32xf32>
    %546 = vector.extract_strided_slice %539 {offsets = [0, 32], sizes = [8, 32], strides = [1, 1]} : vector<8x128xf32> to vector<8x32xf32>
    %547 = arith.negf %546 : vector<8x32xf32>
    %548 = math.exp %547 : vector<8x32xf32>
    %cst_162 = arith.constant 1.000000e+00 : f32
    %549 = vector.broadcast %cst_162 : f32 to vector<8x32xf32>
    %550 = arith.addf %549, %548 : vector<8x32xf32>
    %551 = arith.divf %549, %550 : vector<8x32xf32>
    %552 = vector.extract_strided_slice %539 {offsets = [0, 64], sizes = [8, 32], strides = [1, 1]} : vector<8x128xf32> to vector<8x32xf32>
    %553 = math.tanh %552 : vector<8x32xf32>
    %554 = vector.extract_strided_slice %539 {offsets = [0, 96], sizes = [8, 32], strides = [1, 1]} : vector<8x128xf32> to vector<8x32xf32>
    %555 = arith.negf %554 : vector<8x32xf32>
    %556 = math.exp %555 : vector<8x32xf32>
    %cst_163 = arith.constant 1.000000e+00 : f32
    %557 = vector.broadcast %cst_163 : f32 to vector<8x32xf32>
    %558 = arith.addf %557, %556 : vector<8x32xf32>
    %559 = arith.divf %557, %558 : vector<8x32xf32>
    %560 = arith.mulf %551, %528 : vector<8x32xf32>
    %561 = arith.mulf %545, %553 : vector<8x32xf32>
    %562 = arith.addf %560, %561 : vector<8x32xf32>
    %563 = math.tanh %562 : vector<8x32xf32>
    %564 = arith.mulf %559, %563 : vector<8x32xf32>
    %565 = arith.index_cast %c7_i32_157 : i32 to index
    %c0_164 = arith.constant 0 : index
    %c0_165 = arith.constant 0 : index
    %566 = vector.load %arg15[%565, %c0_164, %c0_165] : memref<8x8x32xf32, #tpu.memory_space<vmem>>, vector<1x8x32xf32>
    %567 = vector.shape_cast %566 : vector<1x8x32xf32> to vector<8x32xf32>
    %568 = vector.shape_cast %564 : vector<8x32xf32> to vector<1x8x32xf32>
    tpu.vector_store %arg15[%565, %c0_164, %c0_165], %568 {strides = array<i32>} : memref<8x8x32xf32, #tpu.memory_space<vmem>>, vector<1x8x32xf32>,
    %c8_i32_166 = arith.constant 8 : i32
    %c0_167 = arith.constant 0 : index
    %c0_168 = arith.constant 0 : index
    %c0_169 = arith.constant 0 : index
    %569 = vector.load %arg15[%c0_167, %c0_168, %c0_169] : memref<8x8x32xf32, #tpu.memory_space<vmem>>, vector<8x8x32xf32>
    %c0_170 = arith.constant 0 : index
    %c0_171 = arith.constant 0 : index
    %c0_172 = arith.constant 0 : index
    %570 = vector.load %arg2[%c0_170, %c0_171, %c0_172] : memref<8x8x1xf32, #tpu.memory_space<vmem>>, vector<8x8x1xf32>
    %571 = vector.broadcast %570 : vector<8x8x1xf32> to vector<8x8x32xf32>
    %572 = arith.mulf %569, %571 : vector<8x8x32xf32>
    %c0_173 = arith.constant 0 : index
    %c0_174 = arith.constant 0 : index
    %c0_175 = arith.constant 0 : index
    %573 = vector.load %arg3[%c0_173, %c0_174, %c0_175] : memref<8x8x1xf32, #tpu.memory_space<vmem>>, vector<8x8x1xf32>
    %574 = vector.broadcast %573 : vector<8x8x1xf32> to vector<8x8x32xf32>
    %575 = arith.mulf %572, %574 : vector<8x8x32xf32>
    %cst_176 = arith.constant dense<0.000000e+00> : vector<8x32xf32>
    %576 = vector.multi_reduction <add>, %575, %cst_176 [0] : vector<8x8x32xf32> to vector<8x32xf32>
    %577 = vector.shape_cast %576 : vector<8x32xf32> to vector<1x8x32xf32>
    %578 = vector.broadcast %577 : vector<1x8x32xf32> to vector<8x8x32xf32>
    %579 = arith.mulf %572, %578 : vector<8x8x32xf32>
    %cst_177 = arith.constant dense<0.000000e+00> : vector<8x8xf32>
    %580 = vector.multi_reduction <add>, %579, %cst_177 [2] : vector<8x8x32xf32> to vector<8x8xf32>
    %581 = vector.shape_cast %580 : vector<8x8xf32> to vector<8x8x1xf32>
    %cst_178 = arith.constant dense<0xFF800000> : vector<8x1xf32>
    %582 = vector.multi_reduction <maximumf>, %581, %cst_178 [0] : vector<8x8x1xf32> to vector<8x1xf32>
    %583 = vector.shape_cast %582 : vector<8x1xf32> to vector<1x8x1xf32>
    %584 = vector.broadcast %583 : vector<1x8x1xf32> to vector<8x8x1xf32>
    %585 = arith.subf %581, %584 : vector<8x8x1xf32>
    %586 = math.exp %585 : vector<8x8x1xf32>
    %cst_179 = arith.constant dense<0.000000e+00> : vector<8x1xf32>
    %587 = vector.multi_reduction <add>, %586, %cst_179 [0] : vector<8x8x1xf32> to vector<8x1xf32>
    %588 = vector.shape_cast %587 : vector<8x1xf32> to vector<1x8x1xf32>
    %589 = vector.broadcast %588 : vector<1x8x1xf32> to vector<8x8x1xf32>
    %590 = arith.divf %586, %589 : vector<8x8x1xf32>
    %591 = vector.broadcast %590 : vector<8x8x1xf32> to vector<8x8x32xf32>
    %592 = arith.mulf %572, %591 : vector<8x8x32xf32>
    %cst_180 = arith.constant dense<0.000000e+00> : vector<8x32xf32>
    %593 = vector.multi_reduction <add>, %592, %cst_180 [0] : vector<8x8x32xf32> to vector<8x32xf32>
    %c0_181 = arith.constant 0 : index
    %c0_182 = arith.constant 0 : index
    %594 = vector.load %arg11[%c0_181, %c0_182] : memref<32x256xf32, #tpu.memory_space<vmem>>, vector<32x256xf32>
    %cst_183 = arith.constant dense<0.000000e+00> : vector<8x256xf32>
    %595 = tpu.matmul %593, %594, %cst_183 {dimension_numbers = #tpu.dot_dimension_numbers<[1], [0], [0], [1], [0, 0, 1, 1], [], []>} : vector<8x32xf32>, vector<32x256xf32>, vector<8x256xf32> -> vector<8x256xf32>
    %c0_184 = arith.constant 0 : index
    %c0_185 = arith.constant 0 : index
    %596 = vector.load %arg12[%c0_184, %c0_185] : memref<1x256xf32, #tpu.memory_space<vmem>>, vector<1x256xf32>
    %597 = vector.broadcast %596 : vector<1x256xf32> to vector<8x256xf32>
    %598 = arith.addf %595, %597 : vector<8x256xf32>
    %c0_186 = arith.constant 0 : index
    %c0_187 = arith.constant 0 : index
    %599 = vector.load %arg13[%c0_186, %c0_187] : memref<8x256xf32, #tpu.memory_space<vmem>>, vector<8x256xf32>
    tpu.vector_store %arg13[%c0_186, %c0_187], %598 {strides = array<i32>} : memref<8x256xf32, #tpu.memory_space<vmem>>, vector<8x256xf32>,
    return
  }
}

</mosaic_0001>

<llo_original>
// kernel: function_gfc_forward.1
$region0: #{function_gfc_forward.1}
  #allocation0 [shape = 'u32[]', space=smem, size = 0x4, offset = 0x4, fixed_abs, tag = 'smem constant byte address 0x4 - core index']
  #allocation1 [shape = 'u32[72,128]{1,0:T(1,128)}', space=vmem, size = 0x9000, scoped, tag = 'internal scratch']
  #allocation2 [shape = 'f32[8,8,128]{2,1,0:T(8,128)}', space=vmem, size = 0x8000, scoped, tag = 'scratch operand']
  #allocation3 [shape = 'f32[8,8,32]{2,1,0:T(8,128)}', space=vmem, size = 0x8000, scoped, tag = 'scratch operand']
  %s0 = inlined_call_operand.vmem [shape: f32[64,16], index: 0, kind: input, shape index: {}]
  %s1 = inlined_call_operand.vmem [shape: f32[64,16], index: 1, kind: input, shape index: {}]
  %s2 = inlined_call_operand.vmem [shape: f32[8,8,1], index: 2, kind: input, shape index: {}]
  %s3 = inlined_call_operand.vmem [shape: f32[8,8,1], index: 3, kind: input, shape index: {}]
  %s4 = inlined_call_operand.vmem [shape: f32[16,128], index: 4, kind: input, shape index: {}]
  %s5 = inlined_call_operand.vmem [shape: f32[16,128], index: 5, kind: input, shape index: {}]
  %s6 = inlined_call_operand.vmem [shape: f32[32,128], index: 6, kind: input, shape index: {}]
  %s7 = inlined_call_operand.vmem [shape: f32[1,128], index: 7, kind: input, shape index: {}]
  %s8 = inlined_call_operand.vmem [shape: f32[32,128], index: 8, kind: input, shape index: {}]
  %s9 = inlined_call_operand.vmem [shape: f32[32,128], index: 9, kind: input, shape index: {}]
  %s10 = inlined_call_operand.vmem [shape: f32[1,128], index: 10, kind: input, shape index: {}]
  %s11 = inlined_call_operand.vmem [shape: f32[32,256], index: 11, kind: input, shape index: {}]
  %s12 = inlined_call_operand.vmem [shape: f32[1,256], index: 12, kind: input, shape index: {}]
  %s13 = inlined_call_operand.vmem [shape: f32[8,256], index: 13, kind: output, shape index: {}]
  %s14 = sld [smem:[#allocation0]]
  $region62: #{function_gfc_forward.1} parent=0
    _
  %s16 = ssub.s32 1, %s14
  %s17 = scalar_select 0, %s16, %s14
  // Predicated region
  $region2: #{function_gfc_forward.1} parent=0 // pred_check
    _
  $region3: #{function_gfc_forward.1} parent=0 // pred_check_branch
    %19 = sbr.rel (0) target = $region5
  $region4: #{function_gfc_forward.1} parent=0 // pred_region
    _
  $region5: #{function_gfc_forward.1} parent=0 // pred_fallthru
    _
  // Predicated region
  $region6: #{function_gfc_forward.1} parent=0 // pred_check
    _
  $region7: #{function_gfc_forward.1} parent=0 // pred_check_branch
    %21 = sbr.rel (0) target = $region9
  $region8: #{function_gfc_forward.1} parent=0 // pred_region
    _
  $region9: #{function_gfc_forward.1} parent=0 // pred_fallthru
    _
  // Predicated region
  $region10: #{function_gfc_forward.1} parent=0 // pred_check
    _
  $region11: #{function_gfc_forward.1} parent=0 // pred_check_branch
    %23 = sbr.rel (0) target = $region13
  $region12: #{function_gfc_forward.1} parent=0 // pred_region
    _
  $region13: #{function_gfc_forward.1} parent=0 // pred_fallthru
    _
  // Predicated region
  $region14: #{function_gfc_forward.1} parent=0 // pred_check
    _
  $region15: #{function_gfc_forward.1} parent=0 // pred_check_branch
    %25 = sbr.rel (0) target = $region17
  $region16: #{function_gfc_forward.1} parent=0 // pred_region
    _
  $region17: #{function_gfc_forward.1} parent=0 // pred_fallthru
    _
  // Predicated region
  $region18: #{function_gfc_forward.1} parent=0 // pred_check
    _
  $region19: #{function_gfc_forward.1} parent=0 // pred_check_branch
    %27 = sbr.rel (0) target = $region21
  $region20: #{function_gfc_forward.1} parent=0 // pred_region
    _
  $region21: #{function_gfc_forward.1} parent=0 // pred_fallthru
    _
  // Predicated region
  $region22: #{function_gfc_forward.1} parent=0 // pred_check
    _
  $region23: #{function_gfc_forward.1} parent=0 // pred_check_branch
    %29 = sbr.rel (0) target = $region25
  $region24: #{function_gfc_forward.1} parent=0 // pred_region
    _
  $region25: #{function_gfc_forward.1} parent=0 // pred_fallthru
    _
  // Predicated region
  $region26: #{function_gfc_forward.1} parent=0 // pred_check
    _
  $region27: #{function_gfc_forward.1} parent=0 // pred_check_branch
    %31 = sbr.rel (0) target = $region29
  $region28: #{function_gfc_forward.1} parent=0 // pred_region
    _
  $region29: #{function_gfc_forward.1} parent=0 // pred_fallthru
    _
  // Predicated region
  $region30: #{function_gfc_forward.1} parent=0 // pred_check
    _
  $region31: #{function_gfc_forward.1} parent=0 // pred_check_branch
    %33 = sbr.rel (0) target = $region33
  $region32: #{function_gfc_forward.1} parent=0 // pred_region
    _
  $region33: #{function_gfc_forward.1} parent=0 // pred_fallthru
    _
  // Predicated region
  $region34: #{function_gfc_forward.1} parent=0 // pred_check
    _
  $region35: #{function_gfc_forward.1} parent=0 // pred_check_branch
    %35 = sbr.rel (0) target = $region37
  $region36: #{function_gfc_forward.1} parent=0 // pred_region
    _
  $region37: #{function_gfc_forward.1} parent=0 // pred_fallthru
    _
  // Predicated region
  $region38: #{function_gfc_forward.1} parent=0 // pred_check
    _
  $region39: #{function_gfc_forward.1} parent=0 // pred_check_branch
    %37 = sbr.rel (0) target = $region41
  $region40: #{function_gfc_forward.1} parent=0 // pred_region
    _
  $region41: #{function_gfc_forward.1} parent=0 // pred_fallthru
    _
  // Predicated region
  $region42: #{function_gfc_forward.1} parent=0 // pred_check
    _
  $region43: #{function_gfc_forward.1} parent=0 // pred_check_branch
    %39 = sbr.rel (0) target = $region45
  $region44: #{function_gfc_forward.1} parent=0 // pred_region
    _
  $region45: #{function_gfc_forward.1} parent=0 // pred_fallthru
    _
  // Predicated region
  $region46: #{function_gfc_forward.1} parent=0 // pred_check
    _
  $region47: #{function_gfc_forward.1} parent=0 // pred_check_branch
    %41 = sbr.rel (0) target = $region49
  $region48: #{function_gfc_forward.1} parent=0 // pred_region
    _
  $region49: #{function_gfc_forward.1} parent=0 // pred_fallthru
    _
  // Predicated region
  $region50: #{function_gfc_forward.1} parent=0 // pred_check
    _
  $region51: #{function_gfc_forward.1} parent=0 // pred_check_branch
    %43 = sbr.rel (0) target = $region53
  $region52: #{function_gfc_forward.1} parent=0 // pred_region
    _
  $region53: #{function_gfc_forward.1} parent=0 // pred_fallthru
    _
  %v44 = vld [vmem:[%s0] sm:$0xff]
  %v45 = vld [vmem:[%s0 + $0x8] sm:$0xff]
  %v46 = vld [vmem:[%s0 + $0x10] sm:$0xff]
  %v47 = vld [vmem:[%s0 + $0x18] sm:$0xff]
  %v48 = vld [vmem:[%s0 + $0x20] sm:$0xff]
  %v49 = vld [vmem:[%s0 + $0x28] sm:$0xff]
  %v50 = vld [vmem:[%s0 + $0x30] sm:$0xff]
  %v51 = vld [vmem:[%s0 + $0x38] sm:$0xff]
  %v52 = vld [vmem:[%s4] sm:$0xff]
  %v53 = vld [vmem:[%s4 + $0x8] sm:$0xff]
  %v54 = vld [vmem:[%s1] sm:$0xff]
  %v55 = vld [vmem:[%s1 + $0x8] sm:$0xff]
  %v56 = vld [vmem:[%s1 + $0x10] sm:$0xff]
  %v57 = vld [vmem:[%s1 + $0x18] sm:$0xff]
  %v58 = vld [vmem:[%s1 + $0x20] sm:$0xff]
  %v59 = vld [vmem:[%s1 + $0x28] sm:$0xff]
  %v60 = vld [vmem:[%s1 + $0x30] sm:$0xff]
  %v61 = vld [vmem:[%s1 + $0x38] sm:$0xff]
  %v62 = vld [vmem:[%s5] sm:$0xff]
  %v63 = vld [vmem:[%s5 + $0x8] sm:$0xff]
  %vm64 = vcmask 130048
  %v66 = vsel %vm64, %v54, 0
  %v69 = vsel %vm64, %v55, 0
  %v72 = vsel %vm64, %v56, 0
  %v75 = vsel %vm64, %v57, 0
  %v78 = vsel %vm64, %v58, 0
  %v81 = vsel %vm64, %v59, 0
  %v84 = vsel %vm64, %v60, 0
  %v87 = vsel %vm64, %v61, 0
  %89 = vmatpush.msra.mxu0 0.0
  %90 = vmatpush.msra.mxu0 0.0
  %91 = vmatpush.msra.mxu0 0.0
  %92 = vmatpush.msra.mxu0 0.0
  %93 = vmatpush.msra.mxu0 0.0
  %94 = vmatpush.msra.mxu0 0.0
  %95 = vmatpush.msra.mxu0 0.0
  %96 = vmatpush.msra.mxu0 0.0
  %97 = vmatpush.msra.mxu0 0.0
  %98 = vmatpush.msra.mxu0 0.0
  %99 = vmatpush.msra.mxu0 0.0
  %100 = vmatpush.msra.mxu0 0.0
  %101 = vmatpush.msra.mxu0 0.0
  %102 = vmatpush.msra.mxu0 0.0
  %103 = vmatpush.msra.mxu0 %v63
  %104 = vmatpush.msra.mxu0 %v62
  %105 = vmatmul.f32.gmra.mxu0 %v66
  %v106 = vpop.f32.mrf.mxu0
  %v107 = vadd.f32 0.0, %v106
  %108 = vmatmul.f32.gmra.mxu0 %v69
  %v109 = vpop.f32.mrf.mxu0
  %v110 = vadd.f32 0.0, %v109
  %111 = vmatmul.f32.gmra.mxu0 %v72
  %v112 = vpop.f32.mrf.mxu0
  %v113 = vadd.f32 0.0, %v112
  %114 = vmatmul.f32.gmra.mxu0 %v75
  %v115 = vpop.f32.mrf.mxu0
  %v116 = vadd.f32 0.0, %v115
  %117 = vmatmul.f32.gmra.mxu0 %v78
  %v118 = vpop.f32.mrf.mxu0
  %v119 = vadd.f32 0.0, %v118
  %120 = vmatmul.f32.gmra.mxu0 %v81
  %v121 = vpop.f32.mrf.mxu0
  %v122 = vadd.f32 0.0, %v121
  %123 = vmatmul.f32.gmra.mxu0 %v84
  %v124 = vpop.f32.mrf.mxu0
  %v125 = vadd.f32 0.0, %v124
  %126 = vmatmul.f32.gmra.mxu0 %v87
  %v127 = vpop.f32.mrf.mxu0
  %v128 = vadd.f32 0.0, %v127
  %129 = vdwg.mxu0
  %v131 = vsel %vm64, %v44, 0
  %v134 = vsel %vm64, %v45, 0
  %v137 = vsel %vm64, %v46, 0
  %v140 = vsel %vm64, %v47, 0
  %v143 = vsel %vm64, %v48, 0
  %v146 = vsel %vm64, %v49, 0
  %v149 = vsel %vm64, %v50, 0
  %v152 = vsel %vm64, %v51, 0
  %154 = vmatpush.msra.mxu0 0.0
  %155 = vmatpush.msra.mxu0 0.0
  %156 = vmatpush.msra.mxu0 0.0
  %157 = vmatpush.msra.mxu0 0.0
  %158 = vmatpush.msra.mxu0 0.0
  %159 = vmatpush.msra.mxu0 0.0
  %160 = vmatpush.msra.mxu0 0.0
  %161 = vmatpush.msra.mxu0 0.0
  %162 = vmatpush.msra.mxu0 0.0
  %163 = vmatpush.msra.mxu0 0.0
  %164 = vmatpush.msra.mxu0 0.0
  %165 = vmatpush.msra.mxu0 0.0
  %166 = vmatpush.msra.mxu0 0.0
  %167 = vmatpush.msra.mxu0 0.0
  %168 = vmatpush.msra.mxu0 %v53
  %169 = vmatpush.msra.mxu0 %v52
  %170 = vmatmul.f32.gmra.mxu0 %v131
  %v171 = vpop.f32.mrf.mxu0
  %v172 = vadd.f32 %v107, %v171
  %173 = vmatmul.f32.gmra.mxu0 %v134
  %v174 = vpop.f32.mrf.mxu0
  %v175 = vadd.f32 %v110, %v174
  %176 = vmatmul.f32.gmra.mxu0 %v137
  %v177 = vpop.f32.mrf.mxu0
  %v178 = vadd.f32 %v113, %v177
  %179 = vmatmul.f32.gmra.mxu0 %v140
  %v180 = vpop.f32.mrf.mxu0
  %v181 = vadd.f32 %v116, %v180
  %182 = vmatmul.f32.gmra.mxu0 %v143
  %v183 = vpop.f32.mrf.mxu0
  %v184 = vadd.f32 %v119, %v183
  %185 = vmatmul.f32.gmra.mxu0 %v146
  %v186 = vpop.f32.mrf.mxu0
  %v187 = vadd.f32 %v122, %v186
  %188 = vmatmul.f32.gmra.mxu0 %v149
  %v189 = vpop.f32.mrf.mxu0
  %v190 = vadd.f32 %v125, %v189
  %191 = vmatmul.f32.gmra.mxu0 %v152
  %v192 = vpop.f32.mrf.mxu0
  %v193 = vadd.f32 %v128, %v192
  %194 = vdwg.mxu0
  %v195 = vld [vmem:[%s7] sm:$0x1]
  %v197 = vperm.slane %v195, 0
  %v199 = vadd.f32 %v172, %v197
  %v200 = vadd.f32 %v175, %v197
  %v201 = vadd.f32 %v178, %v197
  %v202 = vadd.f32 %v181, %v197
  %v203 = vadd.f32 %v184, %v197
  %v204 = vadd.f32 %v187, %v197
  %v205 = vadd.f32 %v190, %v197
  %v206 = vadd.f32 %v193, %v197
  %207 = vst [vmem:[#allocation2] sm:$0xff] %v199
  %208 = vst [vmem:[#allocation2 + $0x8] sm:$0xff] %v200
  %209 = vst [vmem:[#allocation2 + $0x10] sm:$0xff] %v201
  %210 = vst [vmem:[#allocation2 + $0x18] sm:$0xff] %v202
  %211 = vst [vmem:[#allocation2 + $0x20] sm:$0xff] %v203
  %212 = vst [vmem:[#allocation2 + $0x28] sm:$0xff] %v204
  %213 = vst [vmem:[#allocation2 + $0x30] sm:$0xff] %v205
  %214 = vst [vmem:[#allocation2 + $0x38] sm:$0xff] %v206
  %v215 = vld [vmem:[%s6] sm:$0xff]
  %v216 = vld [vmem:[%s6 + $0x8] sm:$0xff]
  %v217 = vld [vmem:[%s6 + $0x10] sm:$0xff]
  %v218 = vld [vmem:[%s6 + $0x18] sm:$0xff]
  %v219 = vld [vmem:[#allocation2] sm:$0xff]
  %vm220 = vcmask 261120
  %v222 = vsel %vm220, 0.0, 0
  %224 = vmatpush.msra.mxu0 0.0
  %225 = vmatpush.msra.mxu0 0.0
  %226 = vmatpush.msra.mxu0 0.0
  %227 = vmatpush.msra.mxu0 0.0
  %228 = vmatpush.msra.mxu0 0.0
  %229 = vmatpush.msra.mxu0 0.0
  %230 = vmatpush.msra.mxu0 0.0
  %231 = vmatpush.msra.mxu0 0.0
  %232 = vmatpush.msra.mxu0 0.0
  %233 = vmatpush.msra.mxu0 0.0
  %234 = vmatpush.msra.mxu0 0.0
  %235 = vmatpush.msra.mxu0 0.0
  %236 = vmatpush.msra.mxu0 %v218
  %237 = vmatpush.msra.mxu0 %v217
  %238 = vmatpush.msra.mxu0 %v216
  %239 = vmatpush.msra.mxu0 %v215
  %240 = vmatmul.f32.gmra.mxu0 %v222
  %v241 = vpop.f32.mrf.mxu0
  %v242 = vadd.f32 0.0, %v241
  %243 = vdwg.mxu0
  %v244 = vadd.f32 %v219, %v242
  %v245 = vxor.u32 %v244, 2147483648
  %v246 = vmul.f32 %v245, 1.442695
  %v247 = vpow.pop %v246
  %v248 = vadd.f32 %v247, 1.0
  %v249 = vrcp.pop %v248
  %v250 = vmul.f32 %v248, %v249
  %v251 = vsub.f32 1.0, %v250
  %v252 = vmul.f32 %v249, %v251
  %v253 = vadd.f32 %v249, %v252
  %vm254 = vweird.f32 %v248
  %vm255 = vweird.f32 %v249
  %vm256 = vmor %vm254, %vm255
  %v257 = vsel %vm256, %v249, %v253
  %v258 = vand.u32 2147483647, %v248
  %vm259 = vcmp.eq.f32.partialorder %v258, 8.507059e+37
  %v260 = vand.u32 %v248, 2147483648
  %v261 = vor.u32 1.1754944e-38, %v260
  %v262 = vsel %vm259, %v261, %v257
  %v263 = vmul.f32 1.0, %v262
  %v264 = vtanh.pop %v244
  %v265 = vmul.f32 %v263, 0.0
  %267 = vrot.lane.b32.xlu0 %v264, 64
  %v268 = vpop.permute.xlu0 %267
  %v270 = vmul.f32 %v263, %v268
  %272 = vrot.lane.b32.xlu0 %v270, 32
  %v273 = vpop.permute.xlu0 %272
  %v275 = vadd.f32 %v265, %v273
  %v276 = vtanh.pop %v275
  %278 = vrot.lane.b32.xlu0 %v276, 64
  %v279 = vpop.permute.xlu0 %278
  %v281 = vmul.f32 %v263, %v279
  %283 = vrot.lane.b32.xlu0 %v281, 32
  %v284 = vpop.permute.xlu0 %283
  %286 = vst.msk [vmem:[#allocation3] sm:$0xff] %vm220, %v284
  %s287 = scalar_lea.vmem [#allocation2], 8
  %v288 = vld [vmem:[%s287] sm:$0xff]
  %v289 = vsel %vm220, %v284, 0
  %291 = vmatpush.msra.mxu0 0.0
  %292 = vmatpush.msra.mxu0 0.0
  %293 = vmatpush.msra.mxu0 0.0
  %294 = vmatpush.msra.mxu0 0.0
  %295 = vmatpush.msra.mxu0 0.0
  %296 = vmatpush.msra.mxu0 0.0
  %297 = vmatpush.msra.mxu0 0.0
  %298 = vmatpush.msra.mxu0 0.0
  %299 = vmatpush.msra.mxu0 0.0
  %300 = vmatpush.msra.mxu0 0.0
  %301 = vmatpush.msra.mxu0 0.0
  %302 = vmatpush.msra.mxu0 0.0
  %303 = vmatpush.msra.mxu0 %v218
  %304 = vmatpush.msra.mxu0 %v217
  %305 = vmatpush.msra.mxu0 %v216
  %306 = vmatpush.msra.mxu0 %v215
  %307 = vmatmul.f32.gmra.mxu0 %v289
  %v308 = vpop.f32.mrf.mxu0
  %v309 = vadd.f32 0.0, %v308
  %310 = vdwg.mxu0
  %v311 = vadd.f32 %v288, %v309
  %v312 = vxor.u32 %v311, 2147483648
  %v313 = vmul.f32 %v312, 1.442695
  %v314 = vpow.pop %v313
  %v315 = vadd.f32 %v314, 1.0
  %v316 = vrcp.pop %v315
  %v317 = vmul.f32 %v315, %v316
  %v318 = vsub.f32 1.0, %v317
  %v319 = vmul.f32 %v316, %v318
  %v320 = vadd.f32 %v316, %v319
  %vm321 = vweird.f32 %v315
  %vm322 = vweird.f32 %v316
  %vm323 = vmor %vm321, %vm322
  %v324 = vsel %vm323, %v316, %v320
  %v325 = vand.u32 2147483647, %v315
  %vm326 = vcmp.eq.f32.partialorder %v325, 8.507059e+37
  %v327 = vand.u32 %v315, 2147483648
  %v328 = vor.u32 1.1754944e-38, %v327
  %v329 = vsel %vm326, %v328, %v324
  %v330 = vmul.f32 1.0, %v329
  %v331 = vtanh.pop %v311
  %v332 = vmul.f32 %v330, %v275
  %334 = vrot.lane.b32.xlu0 %v331, 64
  %v335 = vpop.permute.xlu0 %334
  %v337 = vmul.f32 %v330, %v335
  %339 = vrot.lane.b32.xlu0 %v337, 32
  %v340 = vpop.permute.xlu0 %339
  %v342 = vadd.f32 %v332, %v340
  %v343 = vtanh.pop %v342
  %345 = vrot.lane.b32.xlu0 %v343, 64
  %v346 = vpop.permute.xlu0 %345
  %v348 = vmul.f32 %v330, %v346
  %350 = vrot.lane.b32.xlu0 %v348, 32
  %v351 = vpop.permute.xlu0 %350
  %s353 = scalar_lea.vmem [#allocation3], 8
  %354 = vst.msk [vmem:[%s353] sm:$0xff] %vm220, %v351
  %s355 = scalar_lea.vmem [#allocation2], 16
  %v356 = vld [vmem:[%s355] sm:$0xff]
  %v357 = vsel %vm220, %v351, 0
  %359 = vmatpush.msra.mxu0 0.0
  %360 = vmatpush.msra.mxu0 0.0
  %361 = vmatpush.msra.mxu0 0.0
  %362 = vmatpush.msra.mxu0 0.0
  %363 = vmatpush.msra.mxu0 0.0
  %364 = vmatpush.msra.mxu0 0.0
  %365 = vmatpush.msra.mxu0 0.0
  %366 = vmatpush.msra.mxu0 0.0
  %367 = vmatpush.msra.mxu0 0.0
  %368 = vmatpush.msra.mxu0 0.0
  %369 = vmatpush.msra.mxu0 0.0
  %370 = vmatpush.msra.mxu0 0.0
  %371 = vmatpush.msra.mxu0 %v218
  %372 = vmatpush.msra.mxu0 %v217
  %373 = vmatpush.msra.mxu0 %v216
  %374 = vmatpush.msra.mxu0 %v215
  %375 = vmatmul.f32.gmra.mxu0 %v357
  %v376 = vpop.f32.mrf.mxu0
  %v377 = vadd.f32 0.0, %v376
  %378 = vdwg.mxu0
  %v379 = vadd.f32 %v356, %v377
  %v380 = vxor.u32 %v379, 2147483648
  %v381 = vmul.f32 %v380, 1.442695
  %v382 = vpow.pop %v381
  %v383 = vadd.f32 %v382, 1.0
  %v384 = vrcp.pop %v383
  %v385 = vmul.f32 %v383, %v384
  %v386 = vsub.f32 1.0, %v385
  %v387 = vmul.f32 %v384, %v386
  %v388 = vadd.f32 %v384, %v387
  %vm389 = vweird.f32 %v383
  %vm390 = vweird.f32 %v384
  %vm391 = vmor %vm389, %vm390
  %v392 = vsel %vm391, %v384, %v388
  %v393 = vand.u32 2147483647, %v383
  %vm394 = vcmp.eq.f32.partialorder %v393, 8.507059e+37
  %v395 = vand.u32 %v383, 2147483648
  %v396 = vor.u32 1.1754944e-38, %v395
  %v397 = vsel %vm394, %v396, %v392
  %v398 = vmul.f32 1.0, %v397
  %v399 = vtanh.pop %v379
  %v400 = vmul.f32 %v398, %v342
  %402 = vrot.lane.b32.xlu0 %v399, 64
  %v403 = vpop.permute.xlu0 %402
  %v405 = vmul.f32 %v398, %v403
  %407 = vrot.lane.b32.xlu0 %v405, 32
  %v408 = vpop.permute.xlu0 %407
  %v410 = vadd.f32 %v400, %v408
  %v411 = vtanh.pop %v410
  %413 = vrot.lane.b32.xlu0 %v411, 64
  %v414 = vpop.permute.xlu0 %413
  %v416 = vmul.f32 %v398, %v414
  %418 = vrot.lane.b32.xlu0 %v416, 32
  %v419 = vpop.permute.xlu0 %418
  %s421 = scalar_lea.vmem [#allocation3], 16
  %422 = vst.msk [vmem:[%s421] sm:$0xff] %vm220, %v419
  %s423 = scalar_lea.vmem [#allocation2], 24
  %v424 = vld [vmem:[%s423] sm:$0xff]
  %v425 = vsel %vm220, %v419, 0
  %427 = vmatpush.msra.mxu0 0.0
  %428 = vmatpush.msra.mxu0 0.0
  %429 = vmatpush.msra.mxu0 0.0
  %430 = vmatpush.msra.mxu0 0.0
  %431 = vmatpush.msra.mxu0 0.0
  %432 = vmatpush.msra.mxu0 0.0
  %433 = vmatpush.msra.mxu0 0.0
  %434 = vmatpush.msra.mxu0 0.0
  %435 = vmatpush.msra.mxu0 0.0
  %436 = vmatpush.msra.mxu0 0.0
  %437 = vmatpush.msra.mxu0 0.0
  %438 = vmatpush.msra.mxu0 0.0
  %439 = vmatpush.msra.mxu0 %v218
  %440 = vmatpush.msra.mxu0 %v217
  %441 = vmatpush.msra.mxu0 %v216
  %442 = vmatpush.msra.mxu0 %v215
  %443 = vmatmul.f32.gmra.mxu0 %v425
  %v444 = vpop.f32.mrf.mxu0
  %v445 = vadd.f32 0.0, %v444
  %446 = vdwg.mxu0
  %v447 = vadd.f32 %v424, %v445
  %v448 = vxor.u32 %v447, 2147483648
  %v449 = vmul.f32 %v448, 1.442695
  %v450 = vpow.pop %v449
  %v451 = vadd.f32 %v450, 1.0
  %v452 = vrcp.pop %v451
  %v453 = vmul.f32 %v451, %v452
  %v454 = vsub.f32 1.0, %v453
  %v455 = vmul.f32 %v452, %v454
  %v456 = vadd.f32 %v452, %v455
  %vm457 = vweird.f32 %v451
  %vm458 = vweird.f32 %v452
  %vm459 = vmor %vm457, %vm458
  %v460 = vsel %vm459, %v452, %v456
  %v461 = vand.u32 2147483647, %v451
  %vm462 = vcmp.eq.f32.partialorder %v461, 8.507059e+37
  %v463 = vand.u32 %v451, 2147483648
  %v464 = vor.u32 1.1754944e-38, %v463
  %v465 = vsel %vm462, %v464, %v460
  %v466 = vmul.f32 1.0, %v465
  %v467 = vtanh.pop %v447
  %v468 = vmul.f32 %v466, %v410
  %470 = vrot.lane.b32.xlu0 %v467, 64
  %v471 = vpop.permute.xlu0 %470
  %v473 = vmul.f32 %v466, %v471
  %475 = vrot.lane.b32.xlu0 %v473, 32
  %v476 = vpop.permute.xlu0 %475
  %v478 = vadd.f32 %v468, %v476
  %v479 = vtanh.pop %v478
  %481 = vrot.lane.b32.xlu0 %v479, 64
  %v482 = vpop.permute.xlu0 %481
  %v484 = vmul.f32 %v466, %v482
  %486 = vrot.lane.b32.xlu0 %v484, 32
  %v487 = vpop.permute.xlu0 %486
  %s489 = scalar_lea.vmem [#allocation3], 24
  %490 = vst.msk [vmem:[%s489] sm:$0xff] %vm220, %v487
  %s491 = scalar_lea.vmem [#allocation2], 32
  %v492 = vld [vmem:[%s491] sm:$0xff]
  %v493 = vsel %vm220, %v487, 0
  %495 = vmatpush.msra.mxu0 0.0
  %496 = vmatpush.msra.mxu0 0.0
  %497 = vmatpush.msra.mxu0 0.0
  %498 = vmatpush.msra.mxu0 0.0
  %499 = vmatpush.msra.mxu0 0.0
  %500 = vmatpush.msra.mxu0 0.0
  %501 = vmatpush.msra.mxu0 0.0
  %502 = vmatpush.msra.mxu0 0.0
  %503 = vmatpush.msra.mxu0 0.0
  %504 = vmatpush.msra.mxu0 0.0
  %505 = vmatpush.msra.mxu0 0.0
  %506 = vmatpush.msra.mxu0 0.0
  %507 = vmatpush.msra.mxu0 %v218
  %508 = vmatpush.msra.mxu0 %v217
  %509 = vmatpush.msra.mxu0 %v216
  %510 = vmatpush.msra.mxu0 %v215
  %511 = vmatmul.f32.gmra.mxu0 %v493
  %v512 = vpop.f32.mrf.mxu0
  %v513 = vadd.f32 0.0, %v512
  %514 = vdwg.mxu0
  %v515 = vadd.f32 %v492, %v513
  %v516 = vxor.u32 %v515, 2147483648
  %v517 = vmul.f32 %v516, 1.442695
  %v518 = vpow.pop %v517
  %v519 = vadd.f32 %v518, 1.0
  %v520 = vrcp.pop %v519
  %v521 = vmul.f32 %v519, %v520
  %v522 = vsub.f32 1.0, %v521
  %v523 = vmul.f32 %v520, %v522
  %v524 = vadd.f32 %v520, %v523
  %vm525 = vweird.f32 %v519
  %vm526 = vweird.f32 %v520
  %vm527 = vmor %vm525, %vm526
  %v528 = vsel %vm527, %v520, %v524
  %v529 = vand.u32 2147483647, %v519
  %vm530 = vcmp.eq.f32.partialorder %v529, 8.507059e+37
  %v531 = vand.u32 %v519, 2147483648
  %v532 = vor.u32 1.1754944e-38, %v531
  %v533 = vsel %vm530, %v532, %v528
  %v534 = vmul.f32 1.0, %v533
  %v535 = vtanh.pop %v515
  %v536 = vmul.f32 %v534, %v478
  %538 = vrot.lane.b32.xlu0 %v535, 64
  %v539 = vpop.permute.xlu0 %538
  %v541 = vmul.f32 %v534, %v539
  %543 = vrot.lane.b32.xlu0 %v541, 32
  %v544 = vpop.permute.xlu0 %543
  %v546 = vadd.f32 %v536, %v544
  %v547 = vtanh.pop %v546
  %549 = vrot.lane.b32.xlu0 %v547, 64
  %v550 = vpop.permute.xlu0 %549
  %v552 = vmul.f32 %v534, %v550
  %554 = vrot.lane.b32.xlu0 %v552, 32
  %v555 = vpop.permute.xlu0 %554
  %s557 = scalar_lea.vmem [#allocation3], 32
  %558 = vst.msk [vmem:[%s557] sm:$0xff] %vm220, %v555
  %s559 = scalar_lea.vmem [#allocation2], 40
  %v560 = vld [vmem:[%s559] sm:$0xff]
  %v561 = vsel %vm220, %v555, 0
  %563 = vmatpush.msra.mxu0 0.0
  %564 = vmatpush.msra.mxu0 0.0
  %565 = vmatpush.msra.mxu0 0.0
  %566 = vmatpush.msra.mxu0 0.0
  %567 = vmatpush.msra.mxu0 0.0
  %568 = vmatpush.msra.mxu0 0.0
  %569 = vmatpush.msra.mxu0 0.0
  %570 = vmatpush.msra.mxu0 0.0
  %571 = vmatpush.msra.mxu0 0.0
  %572 = vmatpush.msra.mxu0 0.0
  %573 = vmatpush.msra.mxu0 0.0
  %574 = vmatpush.msra.mxu0 0.0
  %575 = vmatpush.msra.mxu0 %v218
  %576 = vmatpush.msra.mxu0 %v217
  %577 = vmatpush.msra.mxu0 %v216
  %578 = vmatpush.msra.mxu0 %v215
  %579 = vmatmul.f32.gmra.mxu0 %v561
  %v580 = vpop.f32.mrf.mxu0
  %v581 = vadd.f32 0.0, %v580
  %582 = vdwg.mxu0
  %v583 = vadd.f32 %v560, %v581
  %v584 = vxor.u32 %v583, 2147483648
  %v585 = vmul.f32 %v584, 1.442695
  %v586 = vpow.pop %v585
  %v587 = vadd.f32 %v586, 1.0
  %v588 = vrcp.pop %v587
  %v589 = vmul.f32 %v587, %v588
  %v590 = vsub.f32 1.0, %v589
  %v591 = vmul.f32 %v588, %v590
  %v592 = vadd.f32 %v588, %v591
  %vm593 = vweird.f32 %v587
  %vm594 = vweird.f32 %v588
  %vm595 = vmor %vm593, %vm594
  %v596 = vsel %vm595, %v588, %v592
  %v597 = vand.u32 2147483647, %v587
  %vm598 = vcmp.eq.f32.partialorder %v597, 8.507059e+37
  %v599 = vand.u32 %v587, 2147483648
  %v600 = vor.u32 1.1754944e-38, %v599
  %v601 = vsel %vm598, %v600, %v596
  %v602 = vmul.f32 1.0, %v601
  %v603 = vtanh.pop %v583
  %v604 = vmul.f32 %v602, %v546
  %606 = vrot.lane.b32.xlu0 %v603, 64
  %v607 = vpop.permute.xlu0 %606
  %v609 = vmul.f32 %v602, %v607
  %611 = vrot.lane.b32.xlu0 %v609, 32
  %v612 = vpop.permute.xlu0 %611
  %v614 = vadd.f32 %v604, %v612
  %v615 = vtanh.pop %v614
  %617 = vrot.lane.b32.xlu0 %v615, 64
  %v618 = vpop.permute.xlu0 %617
  %v620 = vmul.f32 %v602, %v618
  %622 = vrot.lane.b32.xlu0 %v620, 32
  %v623 = vpop.permute.xlu0 %622
  %s625 = scalar_lea.vmem [#allocation3], 40
  %626 = vst.msk [vmem:[%s625] sm:$0xff] %vm220, %v623
  %s627 = scalar_lea.vmem [#allocation2], 48
  %v628 = vld [vmem:[%s627] sm:$0xff]
  %v629 = vsel %vm220, %v623, 0
  %631 = vmatpush.msra.mxu0 0.0
  %632 = vmatpush.msra.mxu0 0.0
  %633 = vmatpush.msra.mxu0 0.0
  %634 = vmatpush.msra.mxu0 0.0
  %635 = vmatpush.msra.mxu0 0.0
  %636 = vmatpush.msra.mxu0 0.0
  %637 = vmatpush.msra.mxu0 0.0
  %638 = vmatpush.msra.mxu0 0.0
  %639 = vmatpush.msra.mxu0 0.0
  %640 = vmatpush.msra.mxu0 0.0
  %641 = vmatpush.msra.mxu0 0.0
  %642 = vmatpush.msra.mxu0 0.0
  %643 = vmatpush.msra.mxu0 %v218
  %644 = vmatpush.msra.mxu0 %v217
  %645 = vmatpush.msra.mxu0 %v216
  %646 = vmatpush.msra.mxu0 %v215
  %647 = vmatmul.f32.gmra.mxu0 %v629
  %v648 = vpop.f32.mrf.mxu0
  %v649 = vadd.f32 0.0, %v648
  %650 = vdwg.mxu0
  %v651 = vadd.f32 %v628, %v649
  %v652 = vxor.u32 %v651, 2147483648
  %v653 = vmul.f32 %v652, 1.442695
  %v654 = vpow.pop %v653
  %v655 = vadd.f32 %v654, 1.0
  %v656 = vrcp.pop %v655
  %v657 = vmul.f32 %v655, %v656
  %v658 = vsub.f32 1.0, %v657
  %v659 = vmul.f32 %v656, %v658
  %v660 = vadd.f32 %v656, %v659
  %vm661 = vweird.f32 %v655
  %vm662 = vweird.f32 %v656
  %vm663 = vmor %vm661, %vm662
  %v664 = vsel %vm663, %v656, %v660
  %v665 = vand.u32 2147483647, %v655
  %vm666 = vcmp.eq.f32.partialorder %v665, 8.507059e+37
  %v667 = vand.u32 %v655, 2147483648
  %v668 = vor.u32 1.1754944e-38, %v667
  %v669 = vsel %vm666, %v668, %v664
  %v670 = vmul.f32 1.0, %v669
  %v671 = vtanh.pop %v651
  %v672 = vmul.f32 %v670, %v614
  %674 = vrot.lane.b32.xlu0 %v671, 64
  %v675 = vpop.permute.xlu0 %674
  %v677 = vmul.f32 %v670, %v675
  %679 = vrot.lane.b32.xlu0 %v677, 32
  %v680 = vpop.permute.xlu0 %679
  %v682 = vadd.f32 %v672, %v680
  %v683 = vtanh.pop %v682
  %685 = vrot.lane.b32.xlu0 %v683, 64
  %v686 = vpop.permute.xlu0 %685
  %v688 = vmul.f32 %v670, %v686
  %690 = vrot.lane.b32.xlu0 %v688, 32
  %v691 = vpop.permute.xlu0 %690
  %s693 = scalar_lea.vmem [#allocation3], 48
  %694 = vst.msk [vmem:[%s693] sm:$0xff] %vm220, %v691
  %s695 = scalar_lea.vmem [#allocation2], 56
  %v696 = vld [vmem:[%s695] sm:$0xff]
  %v697 = vsel %vm220, %v691, 0
  %699 = vmatpush.msra.mxu0 0.0
  %700 = vmatpush.msra.mxu0 0.0
  %701 = vmatpush.msra.mxu0 0.0
  %702 = vmatpush.msra.mxu0 0.0
  %703 = vmatpush.msra.mxu0 0.0
  %704 = vmatpush.msra.mxu0 0.0
  %705 = vmatpush.msra.mxu0 0.0
  %706 = vmatpush.msra.mxu0 0.0
  %707 = vmatpush.msra.mxu0 0.0
  %708 = vmatpush.msra.mxu0 0.0
  %709 = vmatpush.msra.mxu0 0.0
  %710 = vmatpush.msra.mxu0 0.0
  %711 = vmatpush.msra.mxu0 %v218
  %712 = vmatpush.msra.mxu0 %v217
  %713 = vmatpush.msra.mxu0 %v216
  %714 = vmatpush.msra.mxu0 %v215
  %715 = vmatmul.f32.gmra.mxu0 %v697
  %v716 = vpop.f32.mrf.mxu0
  %v717 = vadd.f32 0.0, %v716
  %718 = vdwg.mxu0
  %v719 = vadd.f32 %v696, %v717
  %v720 = vxor.u32 %v719, 2147483648
  %v721 = vmul.f32 %v720, 1.442695
  %v722 = vpow.pop %v721
  %v723 = vadd.f32 %v722, 1.0
  %v724 = vrcp.pop %v723
  %v725 = vmul.f32 %v723, %v724
  %v726 = vsub.f32 1.0, %v725
  %v727 = vmul.f32 %v724, %v726
  %v728 = vadd.f32 %v724, %v727
  %vm729 = vweird.f32 %v723
  %vm730 = vweird.f32 %v724
  %vm731 = vmor %vm729, %vm730
  %v732 = vsel %vm731, %v724, %v728
  %v733 = vand.u32 2147483647, %v723
  %vm734 = vcmp.eq.f32.partialorder %v733, 8.507059e+37
  %v735 = vand.u32 %v723, 2147483648
  %v736 = vor.u32 1.1754944e-38, %v735
  %v737 = vsel %vm734, %v736, %v732
  %v738 = vmul.f32 1.0, %v737
  %v739 = vtanh.pop %v719
  %v740 = vmul.f32 %v738, %v682
  %742 = vrot.lane.b32.xlu0 %v739, 64
  %v743 = vpop.permute.xlu0 %742
  %v745 = vmul.f32 %v738, %v743
  %747 = vrot.lane.b32.xlu0 %v745, 32
  %v748 = vpop.permute.xlu0 %747
  %v750 = vadd.f32 %v740, %v748
  %v751 = vtanh.pop %v750
  %753 = vrot.lane.b32.xlu0 %v751, 64
  %v754 = vpop.permute.xlu0 %753
  %v756 = vmul.f32 %v738, %v754
  %758 = vrot.lane.b32.xlu0 %v756, 32
  %v759 = vpop.permute.xlu0 %758
  %s761 = scalar_lea.vmem [#allocation3], 56
  %762 = vst.msk [vmem:[%s761] sm:$0xff] %vm220, %v759
  %v763 = vld [vmem:[#allocation3] sm:$0xff]
  %v764 = vld [vmem:[#allocation3 + $0x8] sm:$0xff]
  %v765 = vld [vmem:[#allocation3 + $0x10] sm:$0xff]
  %v766 = vld [vmem:[#allocation3 + $0x18] sm:$0xff]
  %v767 = vld [vmem:[#allocation3 + $0x20] sm:$0xff]
  %v768 = vld [vmem:[#allocation3 + $0x28] sm:$0xff]
  %v769 = vld [vmem:[#allocation3 + $0x30] sm:$0xff]
  %v770 = vld [vmem:[#allocation3 + $0x38] sm:$0xff]
  %v771 = vld [vmem:[%s8] sm:$0xff]
  %v772 = vld [vmem:[%s8 + $0x8] sm:$0xff]
  %v773 = vld [vmem:[%s8 + $0x10] sm:$0xff]
  %v774 = vld [vmem:[%s8 + $0x18] sm:$0xff]
  %v775 = vld [vmem:[%s10] sm:$0x1]
  %v777 = vperm.slane %v775, 0
  %v780 = vsel %vm220, %v763, 0
  %v783 = vsel %vm220, %v764, 0
  %v786 = vsel %vm220, %v765, 0
  %v789 = vsel %vm220, %v766, 0
  %v792 = vsel %vm220, %v767, 0
  %v795 = vsel %vm220, %v768, 0
  %v798 = vsel %vm220, %v769, 0
  %v801 = vsel %vm220, %v770, 0
  %803 = vmatpush.msra.mxu0 0.0
  %804 = vmatpush.msra.mxu0 0.0
  %805 = vmatpush.msra.mxu0 0.0
  %806 = vmatpush.msra.mxu0 0.0
  %807 = vmatpush.msra.mxu0 0.0
  %808 = vmatpush.msra.mxu0 0.0
  %809 = vmatpush.msra.mxu0 0.0
  %810 = vmatpush.msra.mxu0 0.0
  %811 = vmatpush.msra.mxu0 0.0
  %812 = vmatpush.msra.mxu0 0.0
  %813 = vmatpush.msra.mxu0 0.0
  %814 = vmatpush.msra.mxu0 0.0
  %815 = vmatpush.msra.mxu0 %v774
  %816 = vmatpush.msra.mxu0 %v773
  %817 = vmatpush.msra.mxu0 %v772
  %818 = vmatpush.msra.mxu0 %v771
  %819 = vmatmul.f32.gmra.mxu0 %v780
  %v820 = vpop.f32.mrf.mxu0
  %v821 = vadd.f32 %v777, %v820
  %822 = vmatmul.f32.gmra.mxu0 %v783
  %v823 = vpop.f32.mrf.mxu0
  %v824 = vadd.f32 %v777, %v823
  %825 = vmatmul.f32.gmra.mxu0 %v786
  %v826 = vpop.f32.mrf.mxu0
  %v827 = vadd.f32 %v777, %v826
  %828 = vmatmul.f32.gmra.mxu0 %v789
  %v829 = vpop.f32.mrf.mxu0
  %v830 = vadd.f32 %v777, %v829
  %831 = vmatmul.f32.gmra.mxu0 %v792
  %v832 = vpop.f32.mrf.mxu0
  %v833 = vadd.f32 %v777, %v832
  %834 = vmatmul.f32.gmra.mxu0 %v795
  %v835 = vpop.f32.mrf.mxu0
  %v836 = vadd.f32 %v777, %v835
  %837 = vmatmul.f32.gmra.mxu0 %v798
  %v838 = vpop.f32.mrf.mxu0
  %v839 = vadd.f32 %v777, %v838
  %840 = vmatmul.f32.gmra.mxu0 %v801
  %v841 = vpop.f32.mrf.mxu0
  %v842 = vadd.f32 %v777, %v841
  %843 = vdwg.mxu0
  %844 = vst [vmem:[#allocation2] sm:$0xff] %v821
  %845 = vst [vmem:[#allocation2 + $0x8] sm:$0xff] %v824
  %846 = vst [vmem:[#allocation2 + $0x10] sm:$0xff] %v827
  %847 = vst [vmem:[#allocation2 + $0x18] sm:$0xff] %v830
  %848 = vst [vmem:[#allocation2 + $0x20] sm:$0xff] %v833
  %849 = vst [vmem:[#allocation2 + $0x28] sm:$0xff] %v836
  %850 = vst [vmem:[#allocation2 + $0x30] sm:$0xff] %v839
  %851 = vst [vmem:[#allocation2 + $0x38] sm:$0xff] %v842
  %v852 = vld [vmem:[%s9] sm:$0xff]
  %v853 = vld [vmem:[%s9 + $0x8] sm:$0xff]
  %v854 = vld [vmem:[%s9 + $0x10] sm:$0xff]
  %v855 = vld [vmem:[%s9 + $0x18] sm:$0xff]
  %v856 = vld [vmem:[#allocation2] sm:$0xff]
  %857 = vmatpush.msra.mxu0 0.0
  %858 = vmatpush.msra.mxu0 0.0
  %859 = vmatpush.msra.mxu0 0.0
  %860 = vmatpush.msra.mxu0 0.0
  %861 = vmatpush.msra.mxu0 0.0
  %862 = vmatpush.msra.mxu0 0.0
  %863 = vmatpush.msra.mxu0 0.0
  %864 = vmatpush.msra.mxu0 0.0
  %865 = vmatpush.msra.mxu0 0.0
  %866 = vmatpush.msra.mxu0 0.0
  %867 = vmatpush.msra.mxu0 0.0
  %868 = vmatpush.msra.mxu0 0.0
  %869 = vmatpush.msra.mxu0 %v855
  %870 = vmatpush.msra.mxu0 %v854
  %871 = vmatpush.msra.mxu0 %v853
  %872 = vmatpush.msra.mxu0 %v852
  %873 = vmatmul.f32.gmra.mxu0 %v222
  %v874 = vpop.f32.mrf.mxu0
  %v875 = vadd.f32 0.0, %v874
  %876 = vdwg.mxu0
  %v877 = vadd.f32 %v856, %v875
  %v878 = vxor.u32 %v877, 2147483648
  %v879 = vmul.f32 %v878, 1.442695
  %v880 = vpow.pop %v879
  %v881 = vadd.f32 %v880, 1.0
  %v882 = vrcp.pop %v881
  %v883 = vmul.f32 %v881, %v882
  %v884 = vsub.f32 1.0, %v883
  %v885 = vmul.f32 %v882, %v884
  %v886 = vadd.f32 %v882, %v885
  %vm887 = vweird.f32 %v881
  %vm888 = vweird.f32 %v882
  %vm889 = vmor %vm887, %vm888
  %v890 = vsel %vm889, %v882, %v886
  %v891 = vand.u32 2147483647, %v881
  %vm892 = vcmp.eq.f32.partialorder %v891, 8.507059e+37
  %v893 = vand.u32 %v881, 2147483648
  %v894 = vor.u32 1.1754944e-38, %v893
  %v895 = vsel %vm892, %v894, %v890
  %v896 = vmul.f32 1.0, %v895
  %v897 = vtanh.pop %v877
  %v898 = vmul.f32 %v896, 0.0
  %900 = vrot.lane.b32.xlu0 %v897, 64
  %v901 = vpop.permute.xlu0 %900
  %v903 = vmul.f32 %v896, %v901
  %905 = vrot.lane.b32.xlu0 %v903, 32
  %v906 = vpop.permute.xlu0 %905
  %v908 = vadd.f32 %v898, %v906
  %v909 = vtanh.pop %v908
  %911 = vrot.lane.b32.xlu0 %v909, 64
  %v912 = vpop.permute.xlu0 %911
  %v914 = vmul.f32 %v896, %v912
  %916 = vrot.lane.b32.xlu0 %v914, 32
  %v917 = vpop.permute.xlu0 %916
  %919 = vst.msk [vmem:[#allocation3] sm:$0xff] %vm220, %v917
  %v920 = vld [vmem:[%s287] sm:$0xff]
  %v921 = vsel %vm220, %v917, 0
  %923 = vmatpush.msra.mxu0 0.0
  %924 = vmatpush.msra.mxu0 0.0
  %925 = vmatpush.msra.mxu0 0.0
  %926 = vmatpush.msra.mxu0 0.0
  %927 = vmatpush.msra.mxu0 0.0
  %928 = vmatpush.msra.mxu0 0.0
  %929 = vmatpush.msra.mxu0 0.0
  %930 = vmatpush.msra.mxu0 0.0
  %931 = vmatpush.msra.mxu0 0.0
  %932 = vmatpush.msra.mxu0 0.0
  %933 = vmatpush.msra.mxu0 0.0
  %934 = vmatpush.msra.mxu0 0.0
  %935 = vmatpush.msra.mxu0 %v855
  %936 = vmatpush.msra.mxu0 %v854
  %937 = vmatpush.msra.mxu0 %v853
  %938 = vmatpush.msra.mxu0 %v852
  %939 = vmatmul.f32.gmra.mxu0 %v921
  %v940 = vpop.f32.mrf.mxu0
  %v941 = vadd.f32 0.0, %v940
  %942 = vdwg.mxu0
  %v943 = vadd.f32 %v920, %v941
  %v944 = vxor.u32 %v943, 2147483648
  %v945 = vmul.f32 %v944, 1.442695
  %v946 = vpow.pop %v945
  %v947 = vadd.f32 %v946, 1.0
  %v948 = vrcp.pop %v947
  %v949 = vmul.f32 %v947, %v948
  %v950 = vsub.f32 1.0, %v949
  %v951 = vmul.f32 %v948, %v950
  %v952 = vadd.f32 %v948, %v951
  %vm953 = vweird.f32 %v947
  %vm954 = vweird.f32 %v948
  %vm955 = vmor %vm953, %vm954
  %v956 = vsel %vm955, %v948, %v952
  %v957 = vand.u32 2147483647, %v947
  %vm958 = vcmp.eq.f32.partialorder %v957, 8.507059e+37
  %v959 = vand.u32 %v947, 2147483648
  %v960 = vor.u32 1.1754944e-38, %v959
  %v961 = vsel %vm958, %v960, %v956
  %v962 = vmul.f32 1.0, %v961
  %v963 = vtanh.pop %v943
  %v964 = vmul.f32 %v962, %v908
  %966 = vrot.lane.b32.xlu0 %v963, 64
  %v967 = vpop.permute.xlu0 %966
  %v969 = vmul.f32 %v962, %v967
  %971 = vrot.lane.b32.xlu0 %v969, 32
  %v972 = vpop.permute.xlu0 %971
  %v974 = vadd.f32 %v964, %v972
  %v975 = vtanh.pop %v974
  %977 = vrot.lane.b32.xlu0 %v975, 64
  %v978 = vpop.permute.xlu0 %977
  %v980 = vmul.f32 %v962, %v978
  %982 = vrot.lane.b32.xlu0 %v980, 32
  %v983 = vpop.permute.xlu0 %982
  %985 = vst.msk [vmem:[%s353] sm:$0xff] %vm220, %v983
  %v986 = vld [vmem:[%s355] sm:$0xff]
  %v987 = vsel %vm220, %v983, 0
  %989 = vmatpush.msra.mxu0 0.0
  %990 = vmatpush.msra.mxu0 0.0
  %991 = vmatpush.msra.mxu0 0.0
  %992 = vmatpush.msra.mxu0 0.0
  %993 = vmatpush.msra.mxu0 0.0
  %994 = vmatpush.msra.mxu0 0.0
  %995 = vmatpush.msra.mxu0 0.0
  %996 = vmatpush.msra.mxu0 0.0
  %997 = vmatpush.msra.mxu0 0.0
  %998 = vmatpush.msra.mxu0 0.0
  %999 = vmatpush.msra.mxu0 0.0
  %1000 = vmatpush.msra.mxu0 0.0
  %1001 = vmatpush.msra.mxu0 %v855
  %1002 = vmatpush.msra.mxu0 %v854
  %1003 = vmatpush.msra.mxu0 %v853
  %1004 = vmatpush.msra.mxu0 %v852
  %1005 = vmatmul.f32.gmra.mxu0 %v987
  %v1006 = vpop.f32.mrf.mxu0
  %v1007 = vadd.f32 0.0, %v1006
  %1008 = vdwg.mxu0
  %v1009 = vadd.f32 %v986, %v1007
  %v1010 = vxor.u32 %v1009, 2147483648
  %v1011 = vmul.f32 %v1010, 1.442695
  %v1012 = vpow.pop %v1011
  %v1013 = vadd.f32 %v1012, 1.0
  %v1014 = vrcp.pop %v1013
  %v1015 = vmul.f32 %v1013, %v1014
  %v1016 = vsub.f32 1.0, %v1015
  %v1017 = vmul.f32 %v1014, %v1016
  %v1018 = vadd.f32 %v1014, %v1017
  %vm1019 = vweird.f32 %v1013
  %vm1020 = vweird.f32 %v1014
  %vm1021 = vmor %vm1019, %vm1020
  %v1022 = vsel %vm1021, %v1014, %v1018
  %v1023 = vand.u32 2147483647, %v1013
  %vm1024 = vcmp.eq.f32.partialorder %v1023, 8.507059e+37
  %v1025 = vand.u32 %v1013, 2147483648
  %v1026 = vor.u32 1.1754944e-38, %v1025
  %v1027 = vsel %vm1024, %v1026, %v1022
  %v1028 = vmul.f32 1.0, %v1027
  %v1029 = vtanh.pop %v1009
  %v1030 = vmul.f32 %v1028, %v974
  %1032 = vrot.lane.b32.xlu0 %v1029, 64
  %v1033 = vpop.permute.xlu0 %1032
  %v1035 = vmul.f32 %v1028, %v1033
  %1037 = vrot.lane.b32.xlu0 %v1035, 32
  %v1038 = vpop.permute.xlu0 %1037
  %v1040 = vadd.f32 %v1030, %v1038
  %v1041 = vtanh.pop %v1040
  %1043 = vrot.lane.b32.xlu0 %v1041, 64
  %v1044 = vpop.permute.xlu0 %1043
  %v1046 = vmul.f32 %v1028, %v1044
  %1048 = vrot.lane.b32.xlu0 %v1046, 32
  %v1049 = vpop.permute.xlu0 %1048
  %1051 = vst.msk [vmem:[%s421] sm:$0xff] %vm220, %v1049
  %v1052 = vld [vmem:[%s423] sm:$0xff]
  %v1053 = vsel %vm220, %v1049, 0
  %1055 = vmatpush.msra.mxu0 0.0
  %1056 = vmatpush.msra.mxu0 0.0
  %1057 = vmatpush.msra.mxu0 0.0
  %1058 = vmatpush.msra.mxu0 0.0
  %1059 = vmatpush.msra.mxu0 0.0
  %1060 = vmatpush.msra.mxu0 0.0
  %1061 = vmatpush.msra.mxu0 0.0
  %1062 = vmatpush.msra.mxu0 0.0
  %1063 = vmatpush.msra.mxu0 0.0
  %1064 = vmatpush.msra.mxu0 0.0
  %1065 = vmatpush.msra.mxu0 0.0
  %1066 = vmatpush.msra.mxu0 0.0
  %1067 = vmatpush.msra.mxu0 %v855
  %1068 = vmatpush.msra.mxu0 %v854
  %1069 = vmatpush.msra.mxu0 %v853
  %1070 = vmatpush.msra.mxu0 %v852
  %1071 = vmatmul.f32.gmra.mxu0 %v1053
  %v1072 = vpop.f32.mrf.mxu0
  %v1073 = vadd.f32 0.0, %v1072
  %1074 = vdwg.mxu0
  %v1075 = vadd.f32 %v1052, %v1073
  %v1076 = vxor.u32 %v1075, 2147483648
  %v1077 = vmul.f32 %v1076, 1.442695
  %v1078 = vpow.pop %v1077
  %v1079 = vadd.f32 %v1078, 1.0
  %v1080 = vrcp.pop %v1079
  %v1081 = vmul.f32 %v1079, %v1080
  %v1082 = vsub.f32 1.0, %v1081
  %v1083 = vmul.f32 %v1080, %v1082
  %v1084 = vadd.f32 %v1080, %v1083
  %vm1085 = vweird.f32 %v1079
  %vm1086 = vweird.f32 %v1080
  %vm1087 = vmor %vm1085, %vm1086
  %v1088 = vsel %vm1087, %v1080, %v1084
  %v1089 = vand.u32 2147483647, %v1079
  %vm1090 = vcmp.eq.f32.partialorder %v1089, 8.507059e+37
  %v1091 = vand.u32 %v1079, 2147483648
  %v1092 = vor.u32 1.1754944e-38, %v1091
  %v1093 = vsel %vm1090, %v1092, %v1088
  %v1094 = vmul.f32 1.0, %v1093
  %v1095 = vtanh.pop %v1075
  %v1096 = vmul.f32 %v1094, %v1040
  %1098 = vrot.lane.b32.xlu0 %v1095, 64
  %v1099 = vpop.permute.xlu0 %1098
  %v1101 = vmul.f32 %v1094, %v1099
  %1103 = vrot.lane.b32.xlu0 %v1101, 32
  %v1104 = vpop.permute.xlu0 %1103
  %v1106 = vadd.f32 %v1096, %v1104
  %v1107 = vtanh.pop %v1106
  %1109 = vrot.lane.b32.xlu0 %v1107, 64
  %v1110 = vpop.permute.xlu0 %1109
  %v1112 = vmul.f32 %v1094, %v1110
  %1114 = vrot.lane.b32.xlu0 %v1112, 32
  %v1115 = vpop.permute.xlu0 %1114
  %1117 = vst.msk [vmem:[%s489] sm:$0xff] %vm220, %v1115
  %v1118 = vld [vmem:[%s491] sm:$0xff]
  %v1119 = vsel %vm220, %v1115, 0
  %1121 = vmatpush.msra.mxu0 0.0
  %1122 = vmatpush.msra.mxu0 0.0
  %1123 = vmatpush.msra.mxu0 0.0
  %1124 = vmatpush.msra.mxu0 0.0
  %1125 = vmatpush.msra.mxu0 0.0
  %1126 = vmatpush.msra.mxu0 0.0
  %1127 = vmatpush.msra.mxu0 0.0
  %1128 = vmatpush.msra.mxu0 0.0
  %1129 = vmatpush.msra.mxu0 0.0
  %1130 = vmatpush.msra.mxu0 0.0
  %1131 = vmatpush.msra.mxu0 0.0
  %1132 = vmatpush.msra.mxu0 0.0
  %1133 = vmatpush.msra.mxu0 %v855
  %1134 = vmatpush.msra.mxu0 %v854
  %1135 = vmatpush.msra.mxu0 %v853
  %1136 = vmatpush.msra.mxu0 %v852
  %1137 = vmatmul.f32.gmra.mxu0 %v1119
  %v1138 = vpop.f32.mrf.mxu0
  %v1139 = vadd.f32 0.0, %v1138
  %1140 = vdwg.mxu0
  %v1141 = vadd.f32 %v1118, %v1139
  %v1142 = vxor.u32 %v1141, 2147483648
  %v1143 = vmul.f32 %v1142, 1.442695
  %v1144 = vpow.pop %v1143
  %v1145 = vadd.f32 %v1144, 1.0
  %v1146 = vrcp.pop %v1145
  %v1147 = vmul.f32 %v1145, %v1146
  %v1148 = vsub.f32 1.0, %v1147
  %v1149 = vmul.f32 %v1146, %v1148
  %v1150 = vadd.f32 %v1146, %v1149
  %vm1151 = vweird.f32 %v1145
  %vm1152 = vweird.f32 %v1146
  %vm1153 = vmor %vm1151, %vm1152
  %v1154 = vsel %vm1153, %v1146, %v1150
  %v1155 = vand.u32 2147483647, %v1145
  %vm1156 = vcmp.eq.f32.partialorder %v1155, 8.507059e+37
  %v1157 = vand.u32 %v1145, 2147483648
  %v1158 = vor.u32 1.1754944e-38, %v1157
  %v1159 = vsel %vm1156, %v1158, %v1154
  %v1160 = vmul.f32 1.0, %v1159
  %v1161 = vtanh.pop %v1141
  %v1162 = vmul.f32 %v1160, %v1106
  %1164 = vrot.lane.b32.xlu0 %v1161, 64
  %v1165 = vpop.permute.xlu0 %1164
  %v1167 = vmul.f32 %v1160, %v1165
  %1169 = vrot.lane.b32.xlu0 %v1167, 32
  %v1170 = vpop.permute.xlu0 %1169
  %v1172 = vadd.f32 %v1162, %v1170
  %v1173 = vtanh.pop %v1172
  %1175 = vrot.lane.b32.xlu0 %v1173, 64
  %v1176 = vpop.permute.xlu0 %1175
  %v1178 = vmul.f32 %v1160, %v1176
  %1180 = vrot.lane.b32.xlu0 %v1178, 32
  %v1181 = vpop.permute.xlu0 %1180
  %1183 = vst.msk [vmem:[%s557] sm:$0xff] %vm220, %v1181
  %v1184 = vld [vmem:[%s559] sm:$0xff]
  %v1185 = vsel %vm220, %v1181, 0
  %1187 = vmatpush.msra.mxu0 0.0
  %1188 = vmatpush.msra.mxu0 0.0
  %1189 = vmatpush.msra.mxu0 0.0
  %1190 = vmatpush.msra.mxu0 0.0
  %1191 = vmatpush.msra.mxu0 0.0
  %1192 = vmatpush.msra.mxu0 0.0
  %1193 = vmatpush.msra.mxu0 0.0
  %1194 = vmatpush.msra.mxu0 0.0
  %1195 = vmatpush.msra.mxu0 0.0
  %1196 = vmatpush.msra.mxu0 0.0
  %1197 = vmatpush.msra.mxu0 0.0
  %1198 = vmatpush.msra.mxu0 0.0
  %1199 = vmatpush.msra.mxu0 %v855
  %1200 = vmatpush.msra.mxu0 %v854
  %1201 = vmatpush.msra.mxu0 %v853
  %1202 = vmatpush.msra.mxu0 %v852
  %1203 = vmatmul.f32.gmra.mxu0 %v1185
  %v1204 = vpop.f32.mrf.mxu0
  %v1205 = vadd.f32 0.0, %v1204
  %1206 = vdwg.mxu0
  %v1207 = vadd.f32 %v1184, %v1205
  %v1208 = vxor.u32 %v1207, 2147483648
  %v1209 = vmul.f32 %v1208, 1.442695
  %v1210 = vpow.pop %v1209
  %v1211 = vadd.f32 %v1210, 1.0
  %v1212 = vrcp.pop %v1211
  %v1213 = vmul.f32 %v1211, %v1212
  %v1214 = vsub.f32 1.0, %v1213
  %v1215 = vmul.f32 %v1212, %v1214
  %v1216 = vadd.f32 %v1212, %v1215
  %vm1217 = vweird.f32 %v1211
  %vm1218 = vweird.f32 %v1212
  %vm1219 = vmor %vm1217, %vm1218
  %v1220 = vsel %vm1219, %v1212, %v1216
  %v1221 = vand.u32 2147483647, %v1211
  %vm1222 = vcmp.eq.f32.partialorder %v1221, 8.507059e+37
  %v1223 = vand.u32 %v1211, 2147483648
  %v1224 = vor.u32 1.1754944e-38, %v1223
  %v1225 = vsel %vm1222, %v1224, %v1220
  %v1226 = vmul.f32 1.0, %v1225
  %v1227 = vtanh.pop %v1207
  %v1228 = vmul.f32 %v1226, %v1172
  %1230 = vrot.lane.b32.xlu0 %v1227, 64
  %v1231 = vpop.permute.xlu0 %1230
  %v1233 = vmul.f32 %v1226, %v1231
  %1235 = vrot.lane.b32.xlu0 %v1233, 32
  %v1236 = vpop.permute.xlu0 %1235
  %v1238 = vadd.f32 %v1228, %v1236
  %v1239 = vtanh.pop %v1238
  %1241 = vrot.lane.b32.xlu0 %v1239, 64
  %v1242 = vpop.permute.xlu0 %1241
  %v1244 = vmul.f32 %v1226, %v1242
  %1246 = vrot.lane.b32.xlu0 %v1244, 32
  %v1247 = vpop.permute.xlu0 %1246
  %1249 = vst.msk [vmem:[%s625] sm:$0xff] %vm220, %v1247
  %v1250 = vld [vmem:[%s627] sm:$0xff]
  %v1251 = vsel %vm220, %v1247, 0
  %1253 = vmatpush.msra.mxu0 0.0
  %1254 = vmatpush.msra.mxu0 0.0
  %1255 = vmatpush.msra.mxu0 0.0
  %1256 = vmatpush.msra.mxu0 0.0
  %1257 = vmatpush.msra.mxu0 0.0
  %1258 = vmatpush.msra.mxu0 0.0
  %1259 = vmatpush.msra.mxu0 0.0
  %1260 = vmatpush.msra.mxu0 0.0
  %1261 = vmatpush.msra.mxu0 0.0
  %1262 = vmatpush.msra.mxu0 0.0
  %1263 = vmatpush.msra.mxu0 0.0
  %1264 = vmatpush.msra.mxu0 0.0
  %1265 = vmatpush.msra.mxu0 %v855
  %1266 = vmatpush.msra.mxu0 %v854
  %1267 = vmatpush.msra.mxu0 %v853
  %1268 = vmatpush.msra.mxu0 %v852
  %1269 = vmatmul.f32.gmra.mxu0 %v1251
  %v1270 = vpop.f32.mrf.mxu0
  %v1271 = vadd.f32 0.0, %v1270
  %1272 = vdwg.mxu0
  %v1273 = vadd.f32 %v1250, %v1271
  %v1274 = vxor.u32 %v1273, 2147483648
  %v1275 = vmul.f32 %v1274, 1.442695
  %v1276 = vpow.pop %v1275
  %v1277 = vadd.f32 %v1276, 1.0
  %v1278 = vrcp.pop %v1277
  %v1279 = vmul.f32 %v1277, %v1278
  %v1280 = vsub.f32 1.0, %v1279
  %v1281 = vmul.f32 %v1278, %v1280
  %v1282 = vadd.f32 %v1278, %v1281
  %vm1283 = vweird.f32 %v1277
  %vm1284 = vweird.f32 %v1278
  %vm1285 = vmor %vm1283, %vm1284
  %v1286 = vsel %vm1285, %v1278, %v1282
  %v1287 = vand.u32 2147483647, %v1277
  %vm1288 = vcmp.eq.f32.partialorder %v1287, 8.507059e+37
  %v1289 = vand.u32 %v1277, 2147483648
  %v1290 = vor.u32 1.1754944e-38, %v1289
  %v1291 = vsel %vm1288, %v1290, %v1286
  %v1292 = vmul.f32 1.0, %v1291
  %v1293 = vtanh.pop %v1273
  %v1294 = vmul.f32 %v1292, %v1238
  %1296 = vrot.lane.b32.xlu0 %v1293, 64
  %v1297 = vpop.permute.xlu0 %1296
  %v1299 = vmul.f32 %v1292, %v1297
  %1301 = vrot.lane.b32.xlu0 %v1299, 32
  %v1302 = vpop.permute.xlu0 %1301
  %v1304 = vadd.f32 %v1294, %v1302
  %v1305 = vtanh.pop %v1304
  %1307 = vrot.lane.b32.xlu0 %v1305, 64
  %v1308 = vpop.permute.xlu0 %1307
  %v1310 = vmul.f32 %v1292, %v1308
  %1312 = vrot.lane.b32.xlu0 %v1310, 32
  %v1313 = vpop.permute.xlu0 %1312
  %1315 = vst.msk [vmem:[%s693] sm:$0xff] %vm220, %v1313
  %v1316 = vld [vmem:[%s695] sm:$0xff]
  %v1317 = vsel %vm220, %v1313, 0
  %1319 = vmatpush.msra.mxu0 0.0
  %1320 = vmatpush.msra.mxu0 0.0
  %1321 = vmatpush.msra.mxu0 0.0
  %1322 = vmatpush.msra.mxu0 0.0
  %1323 = vmatpush.msra.mxu0 0.0
  %1324 = vmatpush.msra.mxu0 0.0
  %1325 = vmatpush.msra.mxu0 0.0
  %1326 = vmatpush.msra.mxu0 0.0
  %1327 = vmatpush.msra.mxu0 0.0
  %1328 = vmatpush.msra.mxu0 0.0
  %1329 = vmatpush.msra.mxu0 0.0
  %1330 = vmatpush.msra.mxu0 0.0
  %1331 = vmatpush.msra.mxu0 %v855
  %1332 = vmatpush.msra.mxu0 %v854
  %1333 = vmatpush.msra.mxu0 %v853
  %1334 = vmatpush.msra.mxu0 %v852
  %1335 = vmatmul.f32.gmra.mxu0 %v1317
  %v1336 = vpop.f32.mrf.mxu0
  %v1337 = vadd.f32 0.0, %v1336
  %1338 = vdwg.mxu0
  %v1339 = vadd.f32 %v1316, %v1337
  %v1340 = vxor.u32 %v1339, 2147483648
  %v1341 = vmul.f32 %v1340, 1.442695
  %v1342 = vpow.pop %v1341
  %v1343 = vadd.f32 %v1342, 1.0
  %v1344 = vrcp.pop %v1343
  %v1345 = vmul.f32 %v1343, %v1344
  %v1346 = vsub.f32 1.0, %v1345
  %v1347 = vmul.f32 %v1344, %v1346
  %v1348 = vadd.f32 %v1344, %v1347
  %vm1349 = vweird.f32 %v1343
  %vm1350 = vweird.f32 %v1344
  %vm1351 = vmor %vm1349, %vm1350
  %v1352 = vsel %vm1351, %v1344, %v1348
  %v1353 = vand.u32 2147483647, %v1343
  %vm1354 = vcmp.eq.f32.partialorder %v1353, 8.507059e+37
  %v1355 = vand.u32 %v1343, 2147483648
  %v1356 = vor.u32 1.1754944e-38, %v1355
  %v1357 = vsel %vm1354, %v1356, %v1352
  %v1358 = vmul.f32 1.0, %v1357
  %v1359 = vtanh.pop %v1339
  %v1360 = vmul.f32 %v1358, %v1304
  %1362 = vrot.lane.b32.xlu0 %v1359, 64
  %v1363 = vpop.permute.xlu0 %1362
  %v1365 = vmul.f32 %v1358, %v1363
  %1367 = vrot.lane.b32.xlu0 %v1365, 32
  %v1368 = vpop.permute.xlu0 %1367
  %v1370 = vadd.f32 %v1360, %v1368
  %v1371 = vtanh.pop %v1370
  %1373 = vrot.lane.b32.xlu0 %v1371, 64
  %v1374 = vpop.permute.xlu0 %1373
  %v1376 = vmul.f32 %v1358, %v1374
  %1378 = vrot.lane.b32.xlu0 %v1376, 32
  %v1379 = vpop.permute.xlu0 %1378
  %1381 = vst.msk [vmem:[%s761] sm:$0xff] %vm220, %v1379
  %v1382 = vld [vmem:[#allocation3] sm:$0xff]
  %v1383 = vld [vmem:[#allocation3 + $0x8] sm:$0xff]
  %v1384 = vld [vmem:[#allocation3 + $0x10] sm:$0xff]
  %v1385 = vld [vmem:[#allocation3 + $0x18] sm:$0xff]
  %v1386 = vld [vmem:[#allocation3 + $0x20] sm:$0xff]
  %v1387 = vld [vmem:[#allocation3 + $0x28] sm:$0xff]
  %v1388 = vld [vmem:[#allocation3 + $0x30] sm:$0xff]
  %v1389 = vld [vmem:[#allocation3 + $0x38] sm:$0xff]
  %v1390 = vld [vmem:[%s2] sm:$0xff]
  %v1391 = vld [vmem:[%s2 + $0x8] sm:$0xff]
  %v1392 = vld [vmem:[%s2 + $0x10] sm:$0xff]
  %v1393 = vld [vmem:[%s2 + $0x18] sm:$0xff]
  %v1394 = vld [vmem:[%s2 + $0x20] sm:$0xff]
  %v1395 = vld [vmem:[%s2 + $0x28] sm:$0xff]
  %v1396 = vld [vmem:[%s2 + $0x30] sm:$0xff]
  %v1397 = vld [vmem:[%s2 + $0x38] sm:$0xff]
  %1399 = vset.pattern.permute.xlu0 0
  %1400 = vperm.xlu0 %1399, %v1390
  %v1401 = vpop.permute.xlu0 %1400
  %1404 = vset.pattern.permute.xlu0 0
  %1405 = vperm.xlu0 %1404, %v1391
  %v1406 = vpop.permute.xlu0 %1405
  %1409 = vset.pattern.permute.xlu0 0
  %1410 = vperm.xlu0 %1409, %v1392
  %v1411 = vpop.permute.xlu0 %1410
  %1414 = vset.pattern.permute.xlu0 0
  %1415 = vperm.xlu0 %1414, %v1393
  %v1416 = vpop.permute.xlu0 %1415
  %1419 = vset.pattern.permute.xlu0 0
  %1420 = vperm.xlu0 %1419, %v1394
  %v1421 = vpop.permute.xlu0 %1420
  %1424 = vset.pattern.permute.xlu0 0
  %1425 = vperm.xlu0 %1424, %v1395
  %v1426 = vpop.permute.xlu0 %1425
  %1429 = vset.pattern.permute.xlu0 0
  %1430 = vperm.xlu0 %1429, %v1396
  %v1431 = vpop.permute.xlu0 %1430
  %1434 = vset.pattern.permute.xlu0 0
  %1435 = vperm.xlu0 %1434, %v1397
  %v1436 = vpop.permute.xlu0 %1435
  %v1438 = vmul.f32 %v1382, %v1401
  %v1439 = vmul.f32 %v1383, %v1406
  %v1440 = vmul.f32 %v1384, %v1411
  %v1441 = vmul.f32 %v1385, %v1416
  %v1442 = vmul.f32 %v1386, %v1421
  %v1443 = vmul.f32 %v1387, %v1426
  %v1444 = vmul.f32 %v1388, %v1431
  %v1445 = vmul.f32 %v1389, %v1436
  %v1446 = vld [vmem:[%s3] sm:$0xff]
  %v1447 = vld [vmem:[%s3 + $0x8] sm:$0xff]
  %v1448 = vld [vmem:[%s3 + $0x10] sm:$0xff]
  %v1449 = vld [vmem:[%s3 + $0x18] sm:$0xff]
  %v1450 = vld [vmem:[%s3 + $0x20] sm:$0xff]
  %v1451 = vld [vmem:[%s3 + $0x28] sm:$0xff]
  %v1452 = vld [vmem:[%s3 + $0x30] sm:$0xff]
  %v1453 = vld [vmem:[%s3 + $0x38] sm:$0xff]
  %1455 = vset.pattern.permute.xlu0 0
  %1456 = vperm.xlu0 %1455, %v1446
  %v1457 = vpop.permute.xlu0 %1456
  %1460 = vset.pattern.permute.xlu0 0
  %1461 = vperm.xlu0 %1460, %v1447
  %v1462 = vpop.permute.xlu0 %1461
  %1465 = vset.pattern.permute.xlu0 0
  %1466 = vperm.xlu0 %1465, %v1448
  %v1467 = vpop.permute.xlu0 %1466
  %1470 = vset.pattern.permute.xlu0 0
  %1471 = vperm.xlu0 %1470, %v1449
  %v1472 = vpop.permute.xlu0 %1471
  %1475 = vset.pattern.permute.xlu0 0
  %1476 = vperm.xlu0 %1475, %v1450
  %v1477 = vpop.permute.xlu0 %1476
  %1480 = vset.pattern.permute.xlu0 0
  %1481 = vperm.xlu0 %1480, %v1451
  %v1482 = vpop.permute.xlu0 %1481
  %1485 = vset.pattern.permute.xlu0 0
  %1486 = vperm.xlu0 %1485, %v1452
  %v1487 = vpop.permute.xlu0 %1486
  %1490 = vset.pattern.permute.xlu0 0
  %1491 = vperm.xlu0 %1490, %v1453
  %v1492 = vpop.permute.xlu0 %1491
  %v1494 = vmul.f32 %v1438, %v1457
  %v1495 = vmul.f32 %v1439, %v1462
  %v1496 = vmul.f32 %v1440, %v1467
  %v1497 = vmul.f32 %v1441, %v1472
  %v1498 = vmul.f32 %v1442, %v1477
  %v1499 = vmul.f32 %v1443, %v1482
  %v1500 = vmul.f32 %v1444, %v1487
  %v1501 = vmul.f32 %v1445, %v1492
  %v1502 = vsel %vm220, %v1494, 0.0
  %v1503 = vsel %vm220, %v1495, 0.0
  %v1504 = vadd.f32 %v1502, %v1503
  %v1505 = vsel %vm220, %v1496, 0.0
  %v1506 = vadd.f32 %v1504, %v1505
  %v1507 = vsel %vm220, %v1497, 0.0
  %v1508 = vadd.f32 %v1506, %v1507
  %v1509 = vsel %vm220, %v1498, 0.0
  %v1510 = vadd.f32 %v1508, %v1509
  %v1511 = vsel %vm220, %v1499, 0.0
  %v1512 = vadd.f32 %v1510, %v1511
  %v1513 = vsel %vm220, %v1500, 0.0
  %v1514 = vadd.f32 %v1512, %v1513
  %v1515 = vsel %vm220, %v1501, 0.0
  %v1516 = vadd.f32 %v1514, %v1515
  %v1517 = vmul.f32 %v1438, %v1516
  %v1518 = vmul.f32 %v1439, %v1516
  %v1519 = vmul.f32 %v1440, %v1516
  %v1520 = vmul.f32 %v1441, %v1516
  %v1521 = vmul.f32 %v1442, %v1516
  %v1522 = vmul.f32 %v1443, %v1516
  %v1523 = vmul.f32 %v1444, %v1516
  %v1524 = vmul.f32 %v1445, %v1516
  %v1525 = vsel %vm220, %v1517, 0.0
  %1526 = vadd.xlane.f32.xlu0 %v1525
  %v1527 = vpop.xlane.xlu0 %1526
  %v1528 = vsel %vm220, %v1518, 0.0
  %1529 = vadd.xlane.f32.xlu0 %v1528
  %v1530 = vpop.xlane.xlu0 %1529
  %v1531 = vsel %vm220, %v1519, 0.0
  %1532 = vadd.xlane.f32.xlu0 %v1531
  %v1533 = vpop.xlane.xlu0 %1532
  %v1534 = vsel %vm220, %v1520, 0.0
  %1535 = vadd.xlane.f32.xlu0 %v1534
  %v1536 = vpop.xlane.xlu0 %1535
  %v1537 = vsel %vm220, %v1521, 0.0
  %1538 = vadd.xlane.f32.xlu0 %v1537
  %v1539 = vpop.xlane.xlu0 %1538
  %v1540 = vsel %vm220, %v1522, 0.0
  %1541 = vadd.xlane.f32.xlu0 %v1540
  %v1542 = vpop.xlane.xlu0 %1541
  %v1543 = vsel %vm220, %v1523, 0.0
  %1544 = vadd.xlane.f32.xlu0 %v1543
  %v1545 = vpop.xlane.xlu0 %1544
  %v1546 = vsel %vm220, %v1524, 0.0
  %1547 = vadd.xlane.f32.xlu0 %v1546
  %v1548 = vpop.xlane.xlu0 %1547
  %v1549 = vmax.f32 %v1527, %v1539
  %v1550 = vmax.f32 %v1530, %v1542
  %v1551 = vmax.f32 %v1533, %v1545
  %v1552 = vmax.f32 %v1536, %v1548
  %v1553 = vmax.f32 %v1549, %v1550
  %v1554 = vmax.f32 %v1551, %v1552
  %v1555 = vmax.f32 %v1553, %v1554
  %v1556 = vsub.f32 %v1527, %v1555
  %v1557 = vsub.f32 %v1530, %v1555
  %v1558 = vsub.f32 %v1533, %v1555
  %v1559 = vsub.f32 %v1536, %v1555
  %v1560 = vsub.f32 %v1539, %v1555
  %v1561 = vsub.f32 %v1542, %v1555
  %v1562 = vsub.f32 %v1545, %v1555
  %v1563 = vsub.f32 %v1548, %v1555
  %v1564 = vmul.f32 %v1556, 1.442695
  %v1565 = vpow.pop %v1564
  %v1566 = vmul.f32 %v1557, 1.442695
  %v1567 = vpow.pop %v1566
  %v1568 = vmul.f32 %v1558, 1.442695
  %v1569 = vpow.pop %v1568
  %v1570 = vmul.f32 %v1559, 1.442695
  %v1571 = vpow.pop %v1570
  %v1572 = vmul.f32 %v1560, 1.442695
  %v1573 = vpow.pop %v1572
  %v1574 = vmul.f32 %v1561, 1.442695
  %v1575 = vpow.pop %v1574
  %v1576 = vmul.f32 %v1562, 1.442695
  %v1577 = vpow.pop %v1576
  %v1578 = vmul.f32 %v1563, 1.442695
  %v1579 = vpow.pop %v1578
  %v1580 = vadd.f32 %v1565, %v1567
  %v1581 = vadd.f32 %v1580, %v1569
  %v1582 = vadd.f32 %v1581, %v1571
  %v1583 = vadd.f32 %v1582, %v1573
  %v1584 = vadd.f32 %v1583, %v1575
  %v1585 = vadd.f32 %v1584, %v1577
  %v1586 = vadd.f32 %v1585, %v1579
  %v1587 = vrcp.pop %v1586
  %v1588 = vmul.f32 %v1586, %v1587
  %v1589 = vsub.f32 1.0, %v1588
  %v1590 = vmul.f32 %v1587, %v1589
  %v1591 = vadd.f32 %v1587, %v1590
  %vm1592 = vweird.f32 %v1586
  %vm1593 = vweird.f32 %v1587
  %vm1594 = vmor %vm1592, %vm1593
  %v1595 = vsel %vm1594, %v1587, %v1591
  %v1596 = vand.u32 2147483647, %v1586
  %vm1597 = vcmp.eq.f32.partialorder %v1596, 8.507059e+37
  %v1598 = vand.u32 %v1586, 2147483648
  %v1599 = vor.u32 1.1754944e-38, %v1598
  %v1600 = vsel %vm1597, %v1599, %v1595
  %v1601 = vmul.f32 %v1565, %v1600
  %v1602 = vmul.f32 %v1567, %v1600
  %v1603 = vmul.f32 %v1569, %v1600
  %v1604 = vmul.f32 %v1571, %v1600
  %v1605 = vmul.f32 %v1573, %v1600
  %v1606 = vmul.f32 %v1575, %v1600
  %v1607 = vmul.f32 %v1577, %v1600
  %v1608 = vmul.f32 %v1579, %v1600
  %v1609 = vmul.f32 %v1438, %v1601
  %v1610 = vmul.f32 %v1439, %v1602
  %v1611 = vmul.f32 %v1440, %v1603
  %v1612 = vmul.f32 %v1441, %v1604
  %v1613 = vmul.f32 %v1442, %v1605
  %v1614 = vmul.f32 %v1443, %v1606
  %v1615 = vmul.f32 %v1444, %v1607
  %v1616 = vmul.f32 %v1445, %v1608
  %v1617 = vsel %vm220, %v1609, 0.0
  %v1618 = vsel %vm220, %v1610, 0.0
  %v1619 = vadd.f32 %v1617, %v1618
  %v1620 = vsel %vm220, %v1611, 0.0
  %v1621 = vadd.f32 %v1619, %v1620
  %v1622 = vsel %vm220, %v1612, 0.0
  %v1623 = vadd.f32 %v1621, %v1622
  %v1624 = vsel %vm220, %v1613, 0.0
  %v1625 = vadd.f32 %v1623, %v1624
  %v1626 = vsel %vm220, %v1614, 0.0
  %v1627 = vadd.f32 %v1625, %v1626
  %v1628 = vsel %vm220, %v1615, 0.0
  %v1629 = vadd.f32 %v1627, %v1628
  %v1630 = vsel %vm220, %v1616, 0.0
  %v1631 = vadd.f32 %v1629, %v1630
  %v1632 = vld [vmem:[%s11] sm:$0xff]
  %v1633 = vld [vmem:[%s11 + $0x8] sm:$0xff]
  %v1634 = vld [vmem:[%s11 + $0x10] sm:$0xff]
  %v1635 = vld [vmem:[%s11 + $0x18] sm:$0xff]
  %v1636 = vld [vmem:[%s11 + $0x20] sm:$0xff]
  %v1637 = vld [vmem:[%s11 + $0x28] sm:$0xff]
  %v1638 = vld [vmem:[%s11 + $0x30] sm:$0xff]
  %v1639 = vld [vmem:[%s11 + $0x38] sm:$0xff]
  %v1640 = vld [vmem:[%s12] sm:$0x3]
  %v1642 = vperm.slane %v1640, 0
  %v1643 = vperm.slane %v1640, 1
  %v1647 = vsel %vm220, %v1631, 0
  %1649 = vmatpush.msra.mxu0 0.0
  %1650 = vmatpush.msra.mxu0 0.0
  %1651 = vmatpush.msra.mxu0 0.0
  %1652 = vmatpush.msra.mxu0 0.0
  %1653 = vmatpush.msra.mxu0 0.0
  %1654 = vmatpush.msra.mxu0 0.0
  %1655 = vmatpush.msra.mxu0 0.0
  %1656 = vmatpush.msra.mxu0 0.0
  %1657 = vmatpush.msra.mxu0 0.0
  %1658 = vmatpush.msra.mxu0 0.0
  %1659 = vmatpush.msra.mxu0 0.0
  %1660 = vmatpush.msra.mxu0 0.0
  %1661 = vmatpush.msra.mxu0 %v1638
  %1662 = vmatpush.msra.mxu0 %v1636
  %1663 = vmatpush.msra.mxu0 %v1634
  %1664 = vmatpush.msra.mxu0 %v1632
  %1665 = vmatmul.f32.gmra.mxu0 %v1647
  %v1666 = vpop.f32.mrf.mxu0
  %v1667 = vadd.f32 %v1642, %v1666
  %1668 = vdwg.mxu0
  %1669 = vmatpush.msra.mxu0 0.0
  %1670 = vmatpush.msra.mxu0 0.0
  %1671 = vmatpush.msra.mxu0 0.0
  %1672 = vmatpush.msra.mxu0 0.0
  %1673 = vmatpush.msra.mxu0 0.0
  %1674 = vmatpush.msra.mxu0 0.0
  %1675 = vmatpush.msra.mxu0 0.0
  %1676 = vmatpush.msra.mxu0 0.0
  %1677 = vmatpush.msra.mxu0 0.0
  %1678 = vmatpush.msra.mxu0 0.0
  %1679 = vmatpush.msra.mxu0 0.0
  %1680 = vmatpush.msra.mxu0 0.0
  %1681 = vmatpush.msra.mxu0 %v1639
  %1682 = vmatpush.msra.mxu0 %v1637
  %1683 = vmatpush.msra.mxu0 %v1635
  %1684 = vmatpush.msra.mxu0 %v1633
  %1685 = vmatmul.f32.gmra.mxu0 %v1647
  %v1686 = vpop.f32.mrf.mxu0
  %v1687 = vadd.f32 %v1643, %v1686
  %1688 = vdwg.mxu0
  %1689 = vst [vmem:[%s13] sm:$0xff] %v1667
  %1690 = vst [vmem:[%s13 + $0x8] sm:$0xff] %v1687
  // Predicated region
  $region54: #{function_gfc_forward.1} parent=0 // pred_check
    _
  $region55: #{function_gfc_forward.1} parent=0 // pred_check_branch
    %1692 = sbr.rel (0) target = $region57
  $region56: #{function_gfc_forward.1} parent=0 // pred_region
    _
  $region57: #{function_gfc_forward.1} parent=0 // pred_fallthru
    _
  // Predicated region
  $region58: #{function_gfc_forward.1} parent=0 // pred_check
    _
  $region59: #{function_gfc_forward.1} parent=0 // pred_check_branch
    %1694 = sbr.rel (0) target = $region61
  $region60: #{function_gfc_forward.1} parent=0 // pred_region
    _
  $region61: #{function_gfc_forward.1} parent=0 // pred_fallthru
    _

</llo_original>
